<compile_context>
chip_gen: v7x
topology: tpu7x:2x2x1
jax: 0.10.0
libtpu: 0.0.40
codegen_flags: <defaults>
</compile_context>

<pallas_src>
import functools

import jax
import jax.numpy as jnp
from jax.experimental import pallas as pl
from jax.experimental.pallas import tpu as pltpu


# ------------------------- fused LSTM + MLP kernel ---------------------------

def _fused_lstm_mlp_kernel(x_ref, h0_ref, c0_ref, wih_ref, whh_ref, b_ref,
                           w1_ref, b1_ref, w2_ref, b2_ref, w3_ref, b3_ref,
                           q_ref, hfin_ref, cfin_ref,
                           gx_scr, hseq_scr, *, Bt, T, H):
    f32 = jnp.float32
    bf16 = jnp.bfloat16

    # ---- hoisted loads: once, NOT per recurrence step ------------------------
    whh = whh_ref[...]                                    # bf16 [H, 4H], resident all steps
    bias = b_ref[...]                                     # f32  [1, 4H]

    # ---- hoisted input projection over all timesteps (off the serial chain) --
    # x rows are batch-major flat: row index = b*T + t.
    gx_scr[...] = (jnp.dot(x_ref[...].astype(bf16), wih_ref[...],
                           preferred_element_type=f32) + bias)      # [Bt*T, 4H] f32

    h = h0_ref[...].astype(f32)                           # [Bt, H]
    c = c0_ref[...].astype(f32)

    # ---- serial recurrence, fully unrolled (T is small and static) -----------
    # TODO(synk): pltpu.matmul_push_rhs/matmul_acc_lhs could pin W_hh in the MXU across
    # steps; kept as a hoisted bf16 jnp.dot for portability across v5e/v6e/v7x.
    for t in range(T):
        # strided read picks rows {b*T + t for all b} -- no reshape/relayout
        gx_t = gx_scr[pl.ds(t, Bt, stride=T), :]          # [Bt, 4H]
        gates = gx_t + jnp.dot(h.astype(bf16), whh, preferred_element_type=f32)
        sig = jax.nn.sigmoid(gates)                       # one full-width EUP push
        tnh = jnp.tanh(gates)                             # one full-width EUP push
        i_g = sig[:, 0 * H:1 * H]                         # PyTorch gate order: i, f, g, o
        f_g = sig[:, 1 * H:2 * H]
        g_g = tnh[:, 2 * H:3 * H]
        o_g = sig[:, 3 * H:4 * H]
        c = f_g * c + i_g * g_g
        h = o_g * jnp.tanh(c)
        hseq_scr[pl.ds(t * Bt, Bt), :] = h                # contiguous time-major store

    # final LSTM state written exactly once
    hfin_ref[...] = h
    cfin_ref[...] = c

    # ---- assemble batch-major [Bt*T, H] feature slab (row = b*T + t) ----------
    # strided reads replace the old (B, T, H) -> (B*T, H) reshape (no relayout copy)
    feat = jnp.concatenate(
        [hseq_scr[pl.ds(b, T, stride=Bt), :] for b in range(Bt)], axis=0)

    # ---- fused MLP head (bf16 MXU operands, f32 accumulation, f32 ReLU) -------
    y = jnp.dot(feat.astype(bf16), w1_ref[...], preferred_element_type=f32) + b1_ref[...]
    y = jnp.maximum(y, 0.0)
    y = jnp.dot(y.astype(bf16), w2_ref[...], preferred_element_type=f32) + b2_ref[...]
    y = jnp.maximum(y, 0.0)
    q = jnp.dot(y.astype(bf16), w3_ref[...], preferred_element_type=f32) + b3_ref[...]
    q_ref[...] = q.astype(q_ref.dtype)                    # lane-dense (128-padded) store


def fused_forward(obs_flat, h0, c0, kp, B, T, batch_block=None):
    """obs_flat: [B*T, D] batch-major; h0/c0: [B, H]. Returns (q_pad, h_n, c_n)."""
    H = h0.shape[-1]
    D = obs_flat.shape[-1]
    n_out_pad = kp["w3_pad"].shape[-1]
    h1 = kp["w1"].shape[-1]
    h2 = kp["w2"].shape[-1]

    # Batch-block grid: one block per TensorCore at production batch sizes (v7x),
    # and a VMEM-scaling knob when B*T grows.  Toy sizes use a single full block.
    Bt = B if batch_block is None else batch_block
    assert B % Bt == 0, "batch_block must divide B"
    nb = B // Bt

    kernel = functools.partial(_fused_lstm_mlp_kernel, Bt=Bt, T=T, H=H)
    rep = lambda i: (0, 0)  # weights replicated across batch blocks

    grid_spec = pltpu.PrefetchScalarGridSpec(
        num_scalar_prefetch=0,
        grid=(nb,),
        in_specs=[
            pl.BlockSpec((Bt * T, D), lambda i: (i, 0)),        # obs (batch-major flat)
            pl.BlockSpec((Bt, H), lambda i: (i, 0)),            # h0
            pl.BlockSpec((Bt, H), lambda i: (i, 0)),            # c0
            pl.BlockSpec((D, 4 * H), rep),                      # W_ih^T (bf16)
            pl.BlockSpec((H, 4 * H), rep),                      # W_hh^T (bf16)
            pl.BlockSpec((1, 4 * H), rep),                      # b_ih + b_hh (f32)
            pl.BlockSpec((H, h1), rep),                         # MLP weights / biases
            pl.BlockSpec((1, h1), rep),
            pl.BlockSpec((h1, h2), rep),
            pl.BlockSpec((1, h2), rep),
            pl.BlockSpec((h2, n_out_pad), rep),
            pl.BlockSpec((1, n_out_pad), rep),
        ],
        out_specs=(
            pl.BlockSpec((Bt * T, n_out_pad), lambda i: (i, 0)),  # q (lane padded)
            pl.BlockSpec((Bt, H), lambda i: (i, 0)),              # h_n
            pl.BlockSpec((Bt, H), lambda i: (i, 0)),              # c_n
        ),
        scratch_shapes=[
            pltpu.VMEM((Bt * T, 4 * H), jnp.float32),   # hoisted input projection
            pltpu.VMEM((Bt * T, H), jnp.float32),       # time-major h sequence
        ],
    )
    return pl.pallas_call(
        kernel,
        out_shape=(
            jax.ShapeDtypeStruct((B * T, n_out_pad), jnp.float32),
            jax.ShapeDtypeStruct((B, H), jnp.float32),
            jax.ShapeDtypeStruct((B, H), jnp.float32),
        ),
        grid_spec=grid_spec,
        compiler_params=pltpu.CompilerParams(
            dimension_semantics=("parallel",)),
    )(obs_flat, h0, c0, kp["w_ih_t"], kp["w_hh_t"], kp["b_lstm"],
      kp["w1"], kp["b1"], kp["w2"], kp["b2"], kp["w3_pad"], kp["b3_pad"])


# ----------------------------- model wrapper ---------------------------------

def init_params(key, input_dim, lstm_dim, net_arch, num_outputs):
    """f32 'PyTorch-like' parameters (LSTM weights pre-transposed, combined bias)."""
    ks = jax.random.split(key, 10)
    bnd = 1.0 / jnp.sqrt(lstm_dim)
    params = {
        "w_ih_t": jax.random.uniform(ks[0], (input_dim, 4 * lstm_dim), jnp.float32, -bnd, bnd),
        "w_hh_t": jax.random.uniform(ks[1], (lstm_dim, 4 * lstm_dim), jnp.float32, -bnd, bnd),
        "b_lstm": jax.random.uniform(ks[2], (1, 4 * lstm_dim), jnp.float32, -bnd, bnd)
                  + jax.random.uniform(ks[3], (1, 4 * lstm_dim), jnp.float32, -bnd, bnd),
    }
    dims = [lstm_dim] + list(net_arch) + [num_outputs]
    for li in range(3):
        fan_in, fan_out = dims[li], dims[li + 1]
        b = 1.0 / jnp.sqrt(fan_in)
        params[f"w{li + 1}"] = jax.random.uniform(ks[4 + 2 * li], (fan_in, fan_out),
                                                  jnp.float32, -b, b)
        params[f"b{li + 1}"] = jax.random.uniform(ks[5 + 2 * li], (1, fan_out),
                                                  jnp.float32, -b, b)
    return params


def prepare_kernel_params(params, num_outputs):
    """One-time prep (NOT per forward call): bf16 MXU operands, 128-lane-padded head."""
    n_out_pad = ((num_outputs + 127) // 128) * 128
    pad = n_out_pad - num_outputs
    return {
        "w_ih_t": params["w_ih_t"].astype(jnp.bfloat16),
        "w_hh_t": params["w_hh_t"].astype(jnp.bfloat16),
        "b_lstm": params["b_lstm"],                              # stays f32 (post-accum add)
        "w1": params["w1"].astype(jnp.bfloat16),
        "b1": params["b1"],
        "w2": params["w2"].astype(jnp.bfloat16),
        "b2": params["b2"],
        "w3_pad": jnp.pad(params["w3"], ((0, 0), (0, pad))).astype(jnp.bfloat16),
        "b3_pad": jnp.pad(params["b3"], ((0, 0), (0, pad))),
        "num_outputs": num_outputs,
    }


def my_lstm_model_forward(kparams, obs_flat, state, B, T, batch_block=None):
    """obs_flat: [B*T, input_dim]; state: [h0, c0] each [B, lstm_layers=1, H]."""
    H = state[0].shape[-1]
    num_outputs = kparams["num_outputs"]

    x = obs_flat.astype(jnp.float32)                     # [B*T, D], batch-major flat
    h0 = state[0].reshape(B, H)                          # [B,1,H] -> [B,H]  (free)
    c0 = state[1].reshape(B, H)

    q_pad, h_n, c_n = fused_forward(x, h0, c0, kparams, B, T, batch_block=batch_block)

    q = q_pad[:, :num_outputs]
    state_out = [h_n[:, None, :], c_n[:, None, :]]       # back to [B, 1, H]
    return q, state_out


# ------------------------------- reference -----------------------------------

def reference_forward(params, obs_flat, state, B, T):
    D = obs_flat.shape[-1]
    H = state[0].shape[-1]
    x = obs_flat.reshape(B, T, D).astype(jnp.float32)
    h = jnp.transpose(state[0], (1, 0, 2))[0]
    c = jnp.transpose(state[1], (1, 0, 2))[0]
    outs = []
    for t in range(T):
        g = x[:, t] @ params["w_ih_t"] + h @ params["w_hh_t"] + params["b_lstm"]
        i = jax.nn.sigmoid(g[:, 0 * H:1 * H])
        f = jax.nn.sigmoid(g[:, 1 * H:2 * H])
        gg = jnp.tanh(g[:, 2 * H:3 * H])
        o = jax.nn.sigmoid(g[:, 3 * H:4 * H])
        c = f * c + i * gg
        h = o * jnp.tanh(c)
        outs.append(h)
    out = jnp.stack(outs, axis=1).reshape(B * T, H)
    y = jnp.maximum(out @ params["w1"] + params["b1"], 0.0)
    y = jnp.maximum(y @ params["w2"] + params["b2"], 0.0)
    y = y @ params["w3"] + params["b3"]
    return y, [h[:, None, :], c[:, None, :]]


# --------------------------------- main ---------------------------------------

if __name__ == "__main__":
    B, T = 2, 8
    INPUT_DIM = 16          # int(np.product(obs_space.shape))
    LSTM_DIM = 32           # model_config['lstm_dim']
    NET_ARCH = [256, 256]   # model_config['net_arch']
    NUM_OUTPUTS = 8         # num_outputs (dqn path)

    key = jax.random.PRNGKey(0)
    k_param, k_obs = jax.random.split(key)
    params = init_params(k_param, INPUT_DIM, LSTM_DIM, NET_ARCH, NUM_OUTPUTS)
    kparams = prepare_kernel_params(params, NUM_OUTPUTS)   # bf16 cast + pad done once

    obs_flat = jax.random.normal(k_obs, (B * T, INPUT_DIM), jnp.float32)
    state = [jnp.zeros((B, 1, LSTM_DIM), jnp.float32),     # batched get_initial_state
             jnp.zeros((B, 1, LSTM_DIM), jnp.float32)]

    # batch_block=B -> single block at toy size; at production, pick a multiple of 8
    # (e.g. 8) to split sequences across TensorCores (v7x) and bound VMEM.
    q, state_out = my_lstm_model_forward(kparams, obs_flat, state, B, T, batch_block=B)
    q = jax.block_until_ready(q)
    state_out = [jax.block_until_ready(s) for s in state_out]

    q_ref, state_ref = reference_forward(params, obs_flat, state, B, T)
    assert q.shape == (B * T, NUM_OUTPUTS)
    assert state_out[0].shape == (B, 1, LSTM_DIM) and state_out[1].shape == (B, 1, LSTM_DIM)
    # bf16 MXU operands (f32 accumulation) -> slightly relaxed tolerances vs pure f32.
    assert jnp.allclose(q, q_ref, atol=2e-2, rtol=2e-2)
    assert jnp.allclose(state_out[0], state_ref[0], atol=1e-2, rtol=1e-2)
    assert jnp.allclose(state_out[1], state_ref[1], atol=1e-2, rtol=1e-2)

    # TODO(synk): IQN branch (random taus + CosineEmbeddingNetwork) not implemented;
    # default dqn_type == 'dqn' path is reproduced.
    print("KERNEL_OK")
</pallas_src>

<mosaic_0001>
module attributes {stable_mosaic.version = 11 : i64} {
  func.func @_fused_lstm_mlp_kernel(%arg0: i32, %arg1: memref<16x16xf32, #tpu.memory_space<vmem>>, %arg2: memref<2x32xf32, #tpu.memory_space<vmem>>, %arg3: memref<2x32xf32, #tpu.memory_space<vmem>>, %arg4: memref<16x128xbf16, #tpu.memory_space<vmem>>, %arg5: memref<32x128xbf16, #tpu.memory_space<vmem>>, %arg6: memref<1x128xf32, #tpu.memory_space<vmem>>, %arg7: memref<32x256xbf16, #tpu.memory_space<vmem>>, %arg8: memref<1x256xf32, #tpu.memory_space<vmem>>, %arg9: memref<256x256xbf16, #tpu.memory_space<vmem>>, %arg10: memref<1x256xf32, #tpu.memory_space<vmem>>, %arg11: memref<256x128xbf16, #tpu.memory_space<vmem>>, %arg12: memref<1x128xf32, #tpu.memory_space<vmem>>, %arg13: memref<16x128xf32, #tpu.memory_space<vmem>>, %arg14: memref<2x32xf32, #tpu.memory_space<vmem>>, %arg15: memref<2x32xf32, #tpu.memory_space<vmem>>, %arg16: memref<16x128xf32, #tpu.memory_space<vmem>>, %arg17: memref<16x32xf32, #tpu.memory_space<vmem>>) attributes {dimension_semantics = [#tpu.dimension_semantics<parallel>], iteration_bounds = array<i64: 1>, scalar_prefetch = 0 : i64, scratch_operands = 2 : i64, tpu.core_type = #tpu.core_type<tc>, window_params = [{transform_indices = @transform_0, window_bounds = array<i64: 16, 16>}, {transform_indices = @transform_1, window_bounds = array<i64: 2, 32>}, {transform_indices = @transform_2, window_bounds = array<i64: 2, 32>}, {pipeline_mode = #tpu.pipeline_mode<synchronous>, transform_indices = @transform_3, window_bounds = array<i64: 16, 128>}, {pipeline_mode = #tpu.pipeline_mode<synchronous>, transform_indices = @transform_4, window_bounds = array<i64: 32, 128>}, {pipeline_mode = #tpu.pipeline_mode<synchronous>, transform_indices = @transform_5, window_bounds = array<i64: 1, 128>}, {pipeline_mode = #tpu.pipeline_mode<synchronous>, transform_indices = @transform_6, window_bounds = array<i64: 32, 256>}, {pipeline_mode = #tpu.pipeline_mode<synchronous>, transform_indices = @transform_7, window_bounds = array<i64: 1, 256>}, {pipeline_mode = #tpu.pipeline_mode<synchronous>, transform_indices = @transform_8, window_bounds = array<i64: 256, 256>}, {pipeline_mode = #tpu.pipeline_mode<synchronous>, transform_indices = @transform_9, window_bounds = array<i64: 1, 256>}, {pipeline_mode = #tpu.pipeline_mode<synchronous>, transform_indices = @transform_10, window_bounds = array<i64: 256, 128>}, {pipeline_mode = #tpu.pipeline_mode<synchronous>, transform_indices = @transform_11, window_bounds = array<i64: 1, 128>}, {transform_indices = @transform_12, window_bounds = array<i64: 16, 128>}, {transform_indices = @transform_13, window_bounds = array<i64: 2, 32>}, {transform_indices = @transform_14, window_bounds = array<i64: 2, 32>}]} {
    %c0 = arith.constant 0 : index
    %c0_0 = arith.constant 0 : index
    %0 = vector.load %arg5[%c0, %c0_0] : memref<32x128xbf16, #tpu.memory_space<vmem>>, vector<32x128xbf16>
    %c0_1 = arith.constant 0 : index
    %c0_2 = arith.constant 0 : index
    %1 = vector.load %arg6[%c0_1, %c0_2] : memref<1x128xf32, #tpu.memory_space<vmem>>, vector<1x128xf32>
    %c0_3 = arith.constant 0 : index
    %c0_4 = arith.constant 0 : index
    %2 = vector.load %arg1[%c0_3, %c0_4] : memref<16x16xf32, #tpu.memory_space<vmem>>, vector<16x16xf32>
    %3 = arith.truncf %2 : vector<16x16xf32> to vector<16x16xbf16>
    %c0_5 = arith.constant 0 : index
    %c0_6 = arith.constant 0 : index
    %4 = vector.load %arg4[%c0_5, %c0_6] : memref<16x128xbf16, #tpu.memory_space<vmem>>, vector<16x128xbf16>
    %cst = arith.constant dense<0.000000e+00> : vector<16x128xf32>
    %5 = tpu.matmul %3, %4, %cst {dimension_numbers = #tpu.dot_dimension_numbers<[1], [0], [0], [1], [0, 0, 1, 1], [], []>} : vector<16x16xbf16>, vector<16x128xbf16>, vector<16x128xf32> -> vector<16x128xf32>
    %6 = vector.broadcast %1 : vector<1x128xf32> to vector<16x128xf32>
    %7 = arith.addf %5, %6 : vector<16x128xf32>
    %c0_7 = arith.constant 0 : index
    %c0_8 = arith.constant 0 : index
    %8 = vector.load %arg16[%c0_7, %c0_8] : memref<16x128xf32, #tpu.memory_space<vmem>>, vector<16x128xf32>
    tpu.vector_store %arg16[%c0_7, %c0_8], %7 {strides = array<i32>} : memref<16x128xf32, #tpu.memory_space<vmem>>, vector<16x128xf32>,
    %c0_9 = arith.constant 0 : index
    %c0_10 = arith.constant 0 : index
    %9 = vector.load %arg2[%c0_9, %c0_10] : memref<2x32xf32, #tpu.memory_space<vmem>>, vector<2x32xf32>
    %c0_11 = arith.constant 0 : index
    %c0_12 = arith.constant 0 : index
    %10 = vector.load %arg3[%c0_11, %c0_12] : memref<2x32xf32, #tpu.memory_space<vmem>>, vector<2x32xf32>
    %c0_13 = arith.constant 0 : index
    %c0_14 = arith.constant 0 : index
    %11 = tpu.strided_load %arg16[%c0_13, %c0_14] {strides = array<i32: 8, 1>} : memref<16x128xf32, #tpu.memory_space<vmem>>, vector<2x128xf32>
    %12 = arith.truncf %9 : vector<2x32xf32> to vector<2x32xbf16>
    %cst_15 = arith.constant dense<0.000000e+00> : vector<2x128xf32>
    %13 = tpu.matmul %12, %0, %cst_15 {dimension_numbers = #tpu.dot_dimension_numbers<[1], [0], [0], [1], [0, 0, 1, 1], [], []>} : vector<2x32xbf16>, vector<32x128xbf16>, vector<2x128xf32> -> vector<2x128xf32>
    %14 = arith.addf %11, %13 : vector<2x128xf32>
    %15 = arith.negf %14 : vector<2x128xf32>
    %16 = math.exp %15 : vector<2x128xf32>
    %cst_16 = arith.constant 1.000000e+00 : f32
    %17 = vector.broadcast %cst_16 : f32 to vector<2x128xf32>
    %18 = arith.addf %17, %16 : vector<2x128xf32>
    %19 = arith.divf %17, %18 : vector<2x128xf32>
    %20 = math.tanh %14 : vector<2x128xf32>
    %21 = vector.extract_strided_slice %19 {offsets = [0, 0], sizes = [2, 32], strides = [1, 1]} : vector<2x128xf32> to vector<2x32xf32>
    %22 = vector.extract_strided_slice %19 {offsets = [0, 32], sizes = [2, 32], strides = [1, 1]} : vector<2x128xf32> to vector<2x32xf32>
    %23 = vector.extract_strided_slice %20 {offsets = [0, 64], sizes = [2, 32], strides = [1, 1]} : vector<2x128xf32> to vector<2x32xf32>
    %24 = vector.extract_strided_slice %19 {offsets = [0, 96], sizes = [2, 32], strides = [1, 1]} : vector<2x128xf32> to vector<2x32xf32>
    %25 = arith.mulf %22, %10 : vector<2x32xf32>
    %26 = arith.mulf %21, %23 : vector<2x32xf32>
    %27 = arith.addf %25, %26 : vector<2x32xf32>
    %28 = math.tanh %27 : vector<2x32xf32>
    %29 = arith.mulf %24, %28 : vector<2x32xf32>
    %c0_17 = arith.constant 0 : index
    %c0_18 = arith.constant 0 : index
    %30 = vector.load %arg17[%c0_17, %c0_18] : memref<16x32xf32, #tpu.memory_space<vmem>>, vector<2x32xf32>
    tpu.vector_store %arg17[%c0_17, %c0_18], %29 {strides = array<i32>} : memref<16x32xf32, #tpu.memory_space<vmem>>, vector<2x32xf32>,
    %c1 = arith.constant 1 : index
    %c0_19 = arith.constant 0 : index
    %31 = tpu.strided_load %arg16[%c1, %c0_19] {strides = array<i32: 8, 1>} : memref<16x128xf32, #tpu.memory_space<vmem>>, vector<2x128xf32>
    %32 = arith.truncf %29 : vector<2x32xf32> to vector<2x32xbf16>
    %cst_20 = arith.constant dense<0.000000e+00> : vector<2x128xf32>
    %33 = tpu.matmul %32, %0, %cst_20 {dimension_numbers = #tpu.dot_dimension_numbers<[1], [0], [0], [1], [0, 0, 1, 1], [], []>} : vector<2x32xbf16>, vector<32x128xbf16>, vector<2x128xf32> -> vector<2x128xf32>
    %34 = arith.addf %31, %33 : vector<2x128xf32>
    %35 = arith.negf %34 : vector<2x128xf32>
    %36 = math.exp %35 : vector<2x128xf32>
    %cst_21 = arith.constant 1.000000e+00 : f32
    %37 = vector.broadcast %cst_21 : f32 to vector<2x128xf32>
    %38 = arith.addf %37, %36 : vector<2x128xf32>
    %39 = arith.divf %37, %38 : vector<2x128xf32>
    %40 = math.tanh %34 : vector<2x128xf32>
    %41 = vector.extract_strided_slice %39 {offsets = [0, 0], sizes = [2, 32], strides = [1, 1]} : vector<2x128xf32> to vector<2x32xf32>
    %42 = vector.extract_strided_slice %39 {offsets = [0, 32], sizes = [2, 32], strides = [1, 1]} : vector<2x128xf32> to vector<2x32xf32>
    %43 = vector.extract_strided_slice %40 {offsets = [0, 64], sizes = [2, 32], strides = [1, 1]} : vector<2x128xf32> to vector<2x32xf32>
    %44 = vector.extract_strided_slice %39 {offsets = [0, 96], sizes = [2, 32], strides = [1, 1]} : vector<2x128xf32> to vector<2x32xf32>
    %45 = arith.mulf %42, %27 : vector<2x32xf32>
    %46 = arith.mulf %41, %43 : vector<2x32xf32>
    %47 = arith.addf %45, %46 : vector<2x32xf32>
    %48 = math.tanh %47 : vector<2x32xf32>
    %49 = arith.mulf %44, %48 : vector<2x32xf32>
    %c2 = arith.constant 2 : index
    %c0_22 = arith.constant 0 : index
    %50 = vector.load %arg17[%c2, %c0_22] : memref<16x32xf32, #tpu.memory_space<vmem>>, vector<2x32xf32>
    tpu.vector_store %arg17[%c2, %c0_22], %49 {strides = array<i32>} : memref<16x32xf32, #tpu.memory_space<vmem>>, vector<2x32xf32>,
    %c2_23 = arith.constant 2 : index
    %c0_24 = arith.constant 0 : index
    %51 = tpu.strided_load %arg16[%c2_23, %c0_24] {strides = array<i32: 8, 1>} : memref<16x128xf32, #tpu.memory_space<vmem>>, vector<2x128xf32>
    %52 = arith.truncf %49 : vector<2x32xf32> to vector<2x32xbf16>
    %cst_25 = arith.constant dense<0.000000e+00> : vector<2x128xf32>
    %53 = tpu.matmul %52, %0, %cst_25 {dimension_numbers = #tpu.dot_dimension_numbers<[1], [0], [0], [1], [0, 0, 1, 1], [], []>} : vector<2x32xbf16>, vector<32x128xbf16>, vector<2x128xf32> -> vector<2x128xf32>
    %54 = arith.addf %51, %53 : vector<2x128xf32>
    %55 = arith.negf %54 : vector<2x128xf32>
    %56 = math.exp %55 : vector<2x128xf32>
    %cst_26 = arith.constant 1.000000e+00 : f32
    %57 = vector.broadcast %cst_26 : f32 to vector<2x128xf32>
    %58 = arith.addf %57, %56 : vector<2x128xf32>
    %59 = arith.divf %57, %58 : vector<2x128xf32>
    %60 = math.tanh %54 : vector<2x128xf32>
    %61 = vector.extract_strided_slice %59 {offsets = [0, 0], sizes = [2, 32], strides = [1, 1]} : vector<2x128xf32> to vector<2x32xf32>
    %62 = vector.extract_strided_slice %59 {offsets = [0, 32], sizes = [2, 32], strides = [1, 1]} : vector<2x128xf32> to vector<2x32xf32>
    %63 = vector.extract_strided_slice %60 {offsets = [0, 64], sizes = [2, 32], strides = [1, 1]} : vector<2x128xf32> to vector<2x32xf32>
    %64 = vector.extract_strided_slice %59 {offsets = [0, 96], sizes = [2, 32], strides = [1, 1]} : vector<2x128xf32> to vector<2x32xf32>
    %65 = arith.mulf %62, %47 : vector<2x32xf32>
    %66 = arith.mulf %61, %63 : vector<2x32xf32>
    %67 = arith.addf %65, %66 : vector<2x32xf32>
    %68 = math.tanh %67 : vector<2x32xf32>
    %69 = arith.mulf %64, %68 : vector<2x32xf32>
    %c4 = arith.constant 4 : index
    %c0_27 = arith.constant 0 : index
    %70 = vector.load %arg17[%c4, %c0_27] : memref<16x32xf32, #tpu.memory_space<vmem>>, vector<2x32xf32>
    tpu.vector_store %arg17[%c4, %c0_27], %69 {strides = array<i32>} : memref<16x32xf32, #tpu.memory_space<vmem>>, vector<2x32xf32>,
    %c3 = arith.constant 3 : index
    %c0_28 = arith.constant 0 : index
    %71 = tpu.strided_load %arg16[%c3, %c0_28] {strides = array<i32: 8, 1>} : memref<16x128xf32, #tpu.memory_space<vmem>>, vector<2x128xf32>
    %72 = arith.truncf %69 : vector<2x32xf32> to vector<2x32xbf16>
    %cst_29 = arith.constant dense<0.000000e+00> : vector<2x128xf32>
    %73 = tpu.matmul %72, %0, %cst_29 {dimension_numbers = #tpu.dot_dimension_numbers<[1], [0], [0], [1], [0, 0, 1, 1], [], []>} : vector<2x32xbf16>, vector<32x128xbf16>, vector<2x128xf32> -> vector<2x128xf32>
    %74 = arith.addf %71, %73 : vector<2x128xf32>
    %75 = arith.negf %74 : vector<2x128xf32>
    %76 = math.exp %75 : vector<2x128xf32>
    %cst_30 = arith.constant 1.000000e+00 : f32
    %77 = vector.broadcast %cst_30 : f32 to vector<2x128xf32>
    %78 = arith.addf %77, %76 : vector<2x128xf32>
    %79 = arith.divf %77, %78 : vector<2x128xf32>
    %80 = math.tanh %74 : vector<2x128xf32>
    %81 = vector.extract_strided_slice %79 {offsets = [0, 0], sizes = [2, 32], strides = [1, 1]} : vector<2x128xf32> to vector<2x32xf32>
    %82 = vector.extract_strided_slice %79 {offsets = [0, 32], sizes = [2, 32], strides = [1, 1]} : vector<2x128xf32> to vector<2x32xf32>
    %83 = vector.extract_strided_slice %80 {offsets = [0, 64], sizes = [2, 32], strides = [1, 1]} : vector<2x128xf32> to vector<2x32xf32>
    %84 = vector.extract_strided_slice %79 {offsets = [0, 96], sizes = [2, 32], strides = [1, 1]} : vector<2x128xf32> to vector<2x32xf32>
    %85 = arith.mulf %82, %67 : vector<2x32xf32>
    %86 = arith.mulf %81, %83 : vector<2x32xf32>
    %87 = arith.addf %85, %86 : vector<2x32xf32>
    %88 = math.tanh %87 : vector<2x32xf32>
    %89 = arith.mulf %84, %88 : vector<2x32xf32>
    %c6 = arith.constant 6 : index
    %c0_31 = arith.constant 0 : index
    %90 = vector.load %arg17[%c6, %c0_31] : memref<16x32xf32, #tpu.memory_space<vmem>>, vector<2x32xf32>
    tpu.vector_store %arg17[%c6, %c0_31], %89 {strides = array<i32>} : memref<16x32xf32, #tpu.memory_space<vmem>>, vector<2x32xf32>,
    %c4_32 = arith.constant 4 : index
    %c0_33 = arith.constant 0 : index
    %91 = tpu.strided_load %arg16[%c4_32, %c0_33] {strides = array<i32: 8, 1>} : memref<16x128xf32, #tpu.memory_space<vmem>>, vector<2x128xf32>
    %92 = arith.truncf %89 : vector<2x32xf32> to vector<2x32xbf16>
    %cst_34 = arith.constant dense<0.000000e+00> : vector<2x128xf32>
    %93 = tpu.matmul %92, %0, %cst_34 {dimension_numbers = #tpu.dot_dimension_numbers<[1], [0], [0], [1], [0, 0, 1, 1], [], []>} : vector<2x32xbf16>, vector<32x128xbf16>, vector<2x128xf32> -> vector<2x128xf32>
    %94 = arith.addf %91, %93 : vector<2x128xf32>
    %95 = arith.negf %94 : vector<2x128xf32>
    %96 = math.exp %95 : vector<2x128xf32>
    %cst_35 = arith.constant 1.000000e+00 : f32
    %97 = vector.broadcast %cst_35 : f32 to vector<2x128xf32>
    %98 = arith.addf %97, %96 : vector<2x128xf32>
    %99 = arith.divf %97, %98 : vector<2x128xf32>
    %100 = math.tanh %94 : vector<2x128xf32>
    %101 = vector.extract_strided_slice %99 {offsets = [0, 0], sizes = [2, 32], strides = [1, 1]} : vector<2x128xf32> to vector<2x32xf32>
    %102 = vector.extract_strided_slice %99 {offsets = [0, 32], sizes = [2, 32], strides = [1, 1]} : vector<2x128xf32> to vector<2x32xf32>
    %103 = vector.extract_strided_slice %100 {offsets = [0, 64], sizes = [2, 32], strides = [1, 1]} : vector<2x128xf32> to vector<2x32xf32>
    %104 = vector.extract_strided_slice %99 {offsets = [0, 96], sizes = [2, 32], strides = [1, 1]} : vector<2x128xf32> to vector<2x32xf32>
    %105 = arith.mulf %102, %87 : vector<2x32xf32>
    %106 = arith.mulf %101, %103 : vector<2x32xf32>
    %107 = arith.addf %105, %106 : vector<2x32xf32>
    %108 = math.tanh %107 : vector<2x32xf32>
    %109 = arith.mulf %104, %108 : vector<2x32xf32>
    %c8 = arith.constant 8 : index
    %c0_36 = arith.constant 0 : index
    %110 = vector.load %arg17[%c8, %c0_36] : memref<16x32xf32, #tpu.memory_space<vmem>>, vector<2x32xf32>
    tpu.vector_store %arg17[%c8, %c0_36], %109 {strides = array<i32>} : memref<16x32xf32, #tpu.memory_space<vmem>>, vector<2x32xf32>,
    %c5 = arith.constant 5 : index
    %c0_37 = arith.constant 0 : index
    %111 = tpu.strided_load %arg16[%c5, %c0_37] {strides = array<i32: 8, 1>} : memref<16x128xf32, #tpu.memory_space<vmem>>, vector<2x128xf32>
    %112 = arith.truncf %109 : vector<2x32xf32> to vector<2x32xbf16>
    %cst_38 = arith.constant dense<0.000000e+00> : vector<2x128xf32>
    %113 = tpu.matmul %112, %0, %cst_38 {dimension_numbers = #tpu.dot_dimension_numbers<[1], [0], [0], [1], [0, 0, 1, 1], [], []>} : vector<2x32xbf16>, vector<32x128xbf16>, vector<2x128xf32> -> vector<2x128xf32>
    %114 = arith.addf %111, %113 : vector<2x128xf32>
    %115 = arith.negf %114 : vector<2x128xf32>
    %116 = math.exp %115 : vector<2x128xf32>
    %cst_39 = arith.constant 1.000000e+00 : f32
    %117 = vector.broadcast %cst_39 : f32 to vector<2x128xf32>
    %118 = arith.addf %117, %116 : vector<2x128xf32>
    %119 = arith.divf %117, %118 : vector<2x128xf32>
    %120 = math.tanh %114 : vector<2x128xf32>
    %121 = vector.extract_strided_slice %119 {offsets = [0, 0], sizes = [2, 32], strides = [1, 1]} : vector<2x128xf32> to vector<2x32xf32>
    %122 = vector.extract_strided_slice %119 {offsets = [0, 32], sizes = [2, 32], strides = [1, 1]} : vector<2x128xf32> to vector<2x32xf32>
    %123 = vector.extract_strided_slice %120 {offsets = [0, 64], sizes = [2, 32], strides = [1, 1]} : vector<2x128xf32> to vector<2x32xf32>
    %124 = vector.extract_strided_slice %119 {offsets = [0, 96], sizes = [2, 32], strides = [1, 1]} : vector<2x128xf32> to vector<2x32xf32>
    %125 = arith.mulf %122, %107 : vector<2x32xf32>
    %126 = arith.mulf %121, %123 : vector<2x32xf32>
    %127 = arith.addf %125, %126 : vector<2x32xf32>
    %128 = math.tanh %127 : vector<2x32xf32>
    %129 = arith.mulf %124, %128 : vector<2x32xf32>
    %c10 = arith.constant 10 : index
    %c0_40 = arith.constant 0 : index
    %130 = vector.load %arg17[%c10, %c0_40] : memref<16x32xf32, #tpu.memory_space<vmem>>, vector<2x32xf32>
    tpu.vector_store %arg17[%c10, %c0_40], %129 {strides = array<i32>} : memref<16x32xf32, #tpu.memory_space<vmem>>, vector<2x32xf32>,
    %c6_41 = arith.constant 6 : index
    %c0_42 = arith.constant 0 : index
    %131 = tpu.strided_load %arg16[%c6_41, %c0_42] {strides = array<i32: 8, 1>} : memref<16x128xf32, #tpu.memory_space<vmem>>, vector<2x128xf32>
    %132 = arith.truncf %129 : vector<2x32xf32> to vector<2x32xbf16>
    %cst_43 = arith.constant dense<0.000000e+00> : vector<2x128xf32>
    %133 = tpu.matmul %132, %0, %cst_43 {dimension_numbers = #tpu.dot_dimension_numbers<[1], [0], [0], [1], [0, 0, 1, 1], [], []>} : vector<2x32xbf16>, vector<32x128xbf16>, vector<2x128xf32> -> vector<2x128xf32>
    %134 = arith.addf %131, %133 : vector<2x128xf32>
    %135 = arith.negf %134 : vector<2x128xf32>
    %136 = math.exp %135 : vector<2x128xf32>
    %cst_44 = arith.constant 1.000000e+00 : f32
    %137 = vector.broadcast %cst_44 : f32 to vector<2x128xf32>
    %138 = arith.addf %137, %136 : vector<2x128xf32>
    %139 = arith.divf %137, %138 : vector<2x128xf32>
    %140 = math.tanh %134 : vector<2x128xf32>
    %141 = vector.extract_strided_slice %139 {offsets = [0, 0], sizes = [2, 32], strides = [1, 1]} : vector<2x128xf32> to vector<2x32xf32>
    %142 = vector.extract_strided_slice %139 {offsets = [0, 32], sizes = [2, 32], strides = [1, 1]} : vector<2x128xf32> to vector<2x32xf32>
    %143 = vector.extract_strided_slice %140 {offsets = [0, 64], sizes = [2, 32], strides = [1, 1]} : vector<2x128xf32> to vector<2x32xf32>
    %144 = vector.extract_strided_slice %139 {offsets = [0, 96], sizes = [2, 32], strides = [1, 1]} : vector<2x128xf32> to vector<2x32xf32>
    %145 = arith.mulf %142, %127 : vector<2x32xf32>
    %146 = arith.mulf %141, %143 : vector<2x32xf32>
    %147 = arith.addf %145, %146 : vector<2x32xf32>
    %148 = math.tanh %147 : vector<2x32xf32>
    %149 = arith.mulf %144, %148 : vector<2x32xf32>
    %c12 = arith.constant 12 : index
    %c0_45 = arith.constant 0 : index
    %150 = vector.load %arg17[%c12, %c0_45] : memref<16x32xf32, #tpu.memory_space<vmem>>, vector<2x32xf32>
    tpu.vector_store %arg17[%c12, %c0_45], %149 {strides = array<i32>} : memref<16x32xf32, #tpu.memory_space<vmem>>, vector<2x32xf32>,
    %c7 = arith.constant 7 : index
    %c0_46 = arith.constant 0 : index
    %151 = tpu.strided_load %arg16[%c7, %c0_46] {strides = array<i32: 8, 1>} : memref<16x128xf32, #tpu.memory_space<vmem>>, vector<2x128xf32>
    %152 = arith.truncf %149 : vector<2x32xf32> to vector<2x32xbf16>
    %cst_47 = arith.constant dense<0.000000e+00> : vector<2x128xf32>
    %153 = tpu.matmul %152, %0, %cst_47 {dimension_numbers = #tpu.dot_dimension_numbers<[1], [0], [0], [1], [0, 0, 1, 1], [], []>} : vector<2x32xbf16>, vector<32x128xbf16>, vector<2x128xf32> -> vector<2x128xf32>
    %154 = arith.addf %151, %153 : vector<2x128xf32>
    %155 = arith.negf %154 : vector<2x128xf32>
    %156 = math.exp %155 : vector<2x128xf32>
    %cst_48 = arith.constant 1.000000e+00 : f32
    %157 = vector.broadcast %cst_48 : f32 to vector<2x128xf32>
    %158 = arith.addf %157, %156 : vector<2x128xf32>
    %159 = arith.divf %157, %158 : vector<2x128xf32>
    %160 = math.tanh %154 : vector<2x128xf32>
    %161 = vector.extract_strided_slice %159 {offsets = [0, 0], sizes = [2, 32], strides = [1, 1]} : vector<2x128xf32> to vector<2x32xf32>
    %162 = vector.extract_strided_slice %159 {offsets = [0, 32], sizes = [2, 32], strides = [1, 1]} : vector<2x128xf32> to vector<2x32xf32>
    %163 = vector.extract_strided_slice %160 {offsets = [0, 64], sizes = [2, 32], strides = [1, 1]} : vector<2x128xf32> to vector<2x32xf32>
    %164 = vector.extract_strided_slice %159 {offsets = [0, 96], sizes = [2, 32], strides = [1, 1]} : vector<2x128xf32> to vector<2x32xf32>
    %165 = arith.mulf %162, %147 : vector<2x32xf32>
    %166 = arith.mulf %161, %163 : vector<2x32xf32>
    %167 = arith.addf %165, %166 : vector<2x32xf32>
    %168 = math.tanh %167 : vector<2x32xf32>
    %169 = arith.mulf %164, %168 : vector<2x32xf32>
    %c14 = arith.constant 14 : index
    %c0_49 = arith.constant 0 : index
    %170 = vector.load %arg17[%c14, %c0_49] : memref<16x32xf32, #tpu.memory_space<vmem>>, vector<2x32xf32>
    tpu.vector_store %arg17[%c14, %c0_49], %169 {strides = array<i32>} : memref<16x32xf32, #tpu.memory_space<vmem>>, vector<2x32xf32>,
    %c0_50 = arith.constant 0 : index
    %c0_51 = arith.constant 0 : index
    %171 = vector.load %arg14[%c0_50, %c0_51] : memref<2x32xf32, #tpu.memory_space<vmem>>, vector<2x32xf32>
    tpu.vector_store %arg14[%c0_50, %c0_51], %169 {strides = array<i32>} : memref<2x32xf32, #tpu.memory_space<vmem>>, vector<2x32xf32>,
    %c0_52 = arith.constant 0 : index
    %c0_53 = arith.constant 0 : index
    %172 = vector.load %arg15[%c0_52, %c0_53] : memref<2x32xf32, #tpu.memory_space<vmem>>, vector<2x32xf32>
    tpu.vector_store %arg15[%c0_52, %c0_53], %167 {strides = array<i32>} : memref<2x32xf32, #tpu.memory_space<vmem>>, vector<2x32xf32>,
    %c0_54 = arith.constant 0 : index
    %c0_55 = arith.constant 0 : index
    %173 = tpu.strided_load %arg17[%c0_54, %c0_55] {strides = array<i32: 2, 1>} : memref<16x32xf32, #tpu.memory_space<vmem>>, vector<8x32xf32>
    %c1_56 = arith.constant 1 : index
    %c0_57 = arith.constant 0 : index
    %174 = tpu.strided_load %arg17[%c1_56, %c0_57] {strides = array<i32: 2, 1>} : memref<16x32xf32, #tpu.memory_space<vmem>>, vector<8x32xf32>
    %175 = tpu.concatenate %173, %174 in 0 : vector<8x32xf32>, vector<8x32xf32> -> vector<16x32xf32>
    %176 = arith.truncf %175 : vector<16x32xf32> to vector<16x32xbf16>
    %c0_58 = arith.constant 0 : index
    %c0_59 = arith.constant 0 : index
    %177 = vector.load %arg7[%c0_58, %c0_59] : memref<32x256xbf16, #tpu.memory_space<vmem>>, vector<32x256xbf16>
    %cst_60 = arith.constant dense<0.000000e+00> : vector<16x256xf32>
    %178 = tpu.matmul %176, %177, %cst_60 {dimension_numbers = #tpu.dot_dimension_numbers<[1], [0], [0], [1], [0, 0, 1, 1], [], []>} : vector<16x32xbf16>, vector<32x256xbf16>, vector<16x256xf32> -> vector<16x256xf32>
    %c0_61 = arith.constant 0 : index
    %c0_62 = arith.constant 0 : index
    %179 = vector.load %arg8[%c0_61, %c0_62] : memref<1x256xf32, #tpu.memory_space<vmem>>, vector<1x256xf32>
    %180 = vector.broadcast %179 : vector<1x256xf32> to vector<16x256xf32>
    %181 = arith.addf %178, %180 : vector<16x256xf32>
    %cst_63 = arith.constant 0.000000e+00 : f32
    %182 = vector.broadcast %cst_63 : f32 to vector<16x256xf32>
    %183 = arith.maximumf %181, %182 : vector<16x256xf32>
    %184 = arith.truncf %183 : vector<16x256xf32> to vector<16x256xbf16>
    %c0_64 = arith.constant 0 : index
    %c0_65 = arith.constant 0 : index
    %185 = vector.load %arg9[%c0_64, %c0_65] : memref<256x256xbf16, #tpu.memory_space<vmem>>, vector<256x256xbf16>
    %cst_66 = arith.constant dense<0.000000e+00> : vector<16x256xf32>
    %186 = tpu.matmul %184, %185, %cst_66 {dimension_numbers = #tpu.dot_dimension_numbers<[1], [0], [0], [1], [0, 0, 1, 1], [], []>} : vector<16x256xbf16>, vector<256x256xbf16>, vector<16x256xf32> -> vector<16x256xf32>
    %c0_67 = arith.constant 0 : index
    %c0_68 = arith.constant 0 : index
    %187 = vector.load %arg10[%c0_67, %c0_68] : memref<1x256xf32, #tpu.memory_space<vmem>>, vector<1x256xf32>
    %188 = vector.broadcast %187 : vector<1x256xf32> to vector<16x256xf32>
    %189 = arith.addf %186, %188 : vector<16x256xf32>
    %cst_69 = arith.constant 0.000000e+00 : f32
    %190 = vector.broadcast %cst_69 : f32 to vector<16x256xf32>
    %191 = arith.maximumf %189, %190 : vector<16x256xf32>
    %192 = arith.truncf %191 : vector<16x256xf32> to vector<16x256xbf16>
    %c0_70 = arith.constant 0 : index
    %c0_71 = arith.constant 0 : index
    %193 = vector.load %arg11[%c0_70, %c0_71] : memref<256x128xbf16, #tpu.memory_space<vmem>>, vector<256x128xbf16>
    %cst_72 = arith.constant dense<0.000000e+00> : vector<16x128xf32>
    %194 = tpu.matmul %192, %193, %cst_72 {dimension_numbers = #tpu.dot_dimension_numbers<[1], [0], [0], [1], [0, 0, 1, 1], [], []>} : vector<16x256xbf16>, vector<256x128xbf16>, vector<16x128xf32> -> vector<16x128xf32>
    %c0_73 = arith.constant 0 : index
    %c0_74 = arith.constant 0 : index
    %195 = vector.load %arg12[%c0_73, %c0_74] : memref<1x128xf32, #tpu.memory_space<vmem>>, vector<1x128xf32>
    %196 = vector.broadcast %195 : vector<1x128xf32> to vector<16x128xf32>
    %197 = arith.addf %194, %196 : vector<16x128xf32>
    %c0_75 = arith.constant 0 : index
    %c0_76 = arith.constant 0 : index
    %198 = vector.load %arg13[%c0_75, %c0_76] : memref<16x128xf32, #tpu.memory_space<vmem>>, vector<16x128xf32>
    tpu.vector_store %arg13[%c0_75, %c0_76], %197 {strides = array<i32>} : memref<16x128xf32, #tpu.memory_space<vmem>>, vector<16x128xf32>,
    return
  }
  func.func @transform_0(%arg0: i32) -> (i32, i32) {
    %c0_i32 = arith.constant 0 : i32
    %c0_i32_0 = arith.constant 0 : i32
    return %arg0, %c0_i32 : i32, i32
  }
  func.func @transform_1(%arg0: i32) -> (i32, i32) {
    %c0_i32 = arith.constant 0 : i32
    %c0_i32_0 = arith.constant 0 : i32
    return %arg0, %c0_i32 : i32, i32
  }
  func.func @transform_2(%arg0: i32) -> (i32, i32) {
    %c0_i32 = arith.constant 0 : i32
    %c0_i32_0 = arith.constant 0 : i32
    return %arg0, %c0_i32 : i32, i32
  }
  func.func @transform_3(%arg0: i32) -> (i32, i32) {
    %c0_i32 = arith.constant 0 : i32
    %c0_i32_0 = arith.constant 0 : i32
    %c0_i32_1 = arith.constant 0 : i32
    return %c0_i32, %c0_i32_0 : i32, i32
  }
  func.func @transform_4(%arg0: i32) -> (i32, i32) {
    %c0_i32 = arith.constant 0 : i32
    %c0_i32_0 = arith.constant 0 : i32
    %c0_i32_1 = arith.constant 0 : i32
    return %c0_i32, %c0_i32_0 : i32, i32
  }
  func.func @transform_5(%arg0: i32) -> (i32, i32) {
    %c0_i32 = arith.constant 0 : i32
    %c0_i32_0 = arith.constant 0 : i32
    %c0_i32_1 = arith.constant 0 : i32
    return %c0_i32, %c0_i32_0 : i32, i32
  }
  func.func @transform_6(%arg0: i32) -> (i32, i32) {
    %c0_i32 = arith.constant 0 : i32
    %c0_i32_0 = arith.constant 0 : i32
    %c0_i32_1 = arith.constant 0 : i32
    return %c0_i32, %c0_i32_0 : i32, i32
  }
  func.func @transform_7(%arg0: i32) -> (i32, i32) {
    %c0_i32 = arith.constant 0 : i32
    %c0_i32_0 = arith.constant 0 : i32
    %c0_i32_1 = arith.constant 0 : i32
    return %c0_i32, %c0_i32_0 : i32, i32
  }
  func.func @transform_8(%arg0: i32) -> (i32, i32) {
    %c0_i32 = arith.constant 0 : i32
    %c0_i32_0 = arith.constant 0 : i32
    %c0_i32_1 = arith.constant 0 : i32
    return %c0_i32, %c0_i32_0 : i32, i32
  }
  func.func @transform_9(%arg0: i32) -> (i32, i32) {
    %c0_i32 = arith.constant 0 : i32
    %c0_i32_0 = arith.constant 0 : i32
    %c0_i32_1 = arith.constant 0 : i32
    return %c0_i32, %c0_i32_0 : i32, i32
  }
  func.func @transform_10(%arg0: i32) -> (i32, i32) {
    %c0_i32 = arith.constant 0 : i32
    %c0_i32_0 = arith.constant 0 : i32
    %c0_i32_1 = arith.constant 0 : i32
    return %c0_i32, %c0_i32_0 : i32, i32
  }
  func.func @transform_11(%arg0: i32) -> (i32, i32) {
    %c0_i32 = arith.constant 0 : i32
    %c0_i32_0 = arith.constant 0 : i32
    %c0_i32_1 = arith.constant 0 : i32
    return %c0_i32, %c0_i32_0 : i32, i32
  }
  func.func @transform_12(%arg0: i32) -> (i32, i32) {
    %c0_i32 = arith.constant 0 : i32
    %c0_i32_0 = arith.constant 0 : i32
    return %arg0, %c0_i32 : i32, i32
  }
  func.func @transform_13(%arg0: i32) -> (i32, i32) {
    %c0_i32 = arith.constant 0 : i32
    %c0_i32_0 = arith.constant 0 : i32
    return %arg0, %c0_i32 : i32, i32
  }
  func.func @transform_14(%arg0: i32) -> (i32, i32) {
    %c0_i32 = arith.constant 0 : i32
    %c0_i32_0 = arith.constant 0 : i32
    return %arg0, %c0_i32 : i32, i32
  }
}

</mosaic_0001>

<llo_original>
// kernel: tpu_custom_call.1
$region0: #{tpu_custom_call.1}
  #allocation0 [shape = 'u32[]', space=smem, size = 0x4, offset = 0x4, fixed_abs, tag = 'smem constant byte address 0x4 - core index']
  #allocation1 [shape = 'u32[144,128]{1,0:T(1,128)}', space=vmem, size = 0x12000, scoped, tag = 'internal scratch']
  #allocation2 [shape = 'f32[16,128]{1,0:T(8,128)}', space=vmem, size = 0x2000, scoped, tag = 'scratch operand']
  #allocation3 [shape = 'f32[16,32]{1,0:T(8,128)}', space=vmem, size = 0x2000, scoped, tag = 'scratch operand']
  %s0 = inlined_call_operand.hbm [shape: f32[16,16], index: 0, kind: input, shape index: {}]
  %s1 = inlined_call_operand.vmem [shape: f32[2,32], index: 1, kind: input, shape index: {}]
  %s2 = inlined_call_operand.hbm [shape: f32[2,32], index: 2, kind: input, shape index: {}]
  %s3 = inlined_call_operand.vmem [shape: bf16[16,128], index: 3, kind: input, shape index: {}]
  %s4 = inlined_call_operand.hbm [shape: bf16[32,128], index: 4, kind: input, shape index: {}]
  %s5 = inlined_call_operand.vmem [shape: f32[1,128], index: 5, kind: input, shape index: {}]
  %s6 = inlined_call_operand.hbm [shape: bf16[32,256], index: 6, kind: input, shape index: {}]
  %s7 = inlined_call_operand.vmem [shape: f32[1,256], index: 7, kind: input, shape index: {}]
  %s8 = inlined_call_operand.hbm [shape: bf16[256,256], index: 8, kind: input, shape index: {}]
  %s9 = inlined_call_operand.vmem [shape: f32[1,256], index: 9, kind: input, shape index: {}]
  %s10 = inlined_call_operand.hbm [shape: bf16[256,128], index: 10, kind: input, shape index: {}]
  %s11 = inlined_call_operand.vmem [shape: f32[1,128], index: 11, kind: input, shape index: {}]
  %s12 = inlined_call_operand.hbm [shape: f32[16,128], index: 12, kind: output, shape index: {0}]
  %s13 = inlined_call_operand.hbm [shape: f32[2,32], index: 13, kind: output, shape index: {1}]
  %s14 = inlined_call_operand.hbm [shape: f32[2,32], index: 14, kind: output, shape index: {2}]
  %15 = xla_tuple %s12, %s13, %s14
  %s16 = sld [smem:[#allocation0]]
  $region98: #{tpu_custom_call.1} parent=0
    _
  %s18 = ssub.s32 1, %s16
  %s19 = scalar_select 0, %s18, %s16
  $region1: #{tpu_custom_call.1} parent=0
    #allocation4 [shape = 'u8[8192]{0}', space=vmem, size = 0x2000, scoped, tag = 'input window, operand 0, single buffered']
    #allocation5 [shape = 's32[1]{0}', space=sflag, size = 0x4, scoped, tag = 'scoped memory for tpu_custom_call.1']
    #allocation6 [shape = 's32[1]{0}', space=sflag, size = 0x4, scoped, tag = 'scoped memory for tpu_custom_call.1']
    #allocation7 [shape = 'u8[1024]{0}', space=vmem, size = 0x400, scoped, tag = 'input window, operand 2, single buffered']
    #allocation8 [shape = 's32[1]{0}', space=sflag, size = 0x4, scoped, tag = 'scoped memory for tpu_custom_call.1']
    #allocation9 [shape = 'u8[8192]{0}', space=vmem, size = 0x2000, scoped, tag = 'input window, operand 4, single buffered']
    #allocation10 [shape = 'u8[16384]{0}', space=vmem, size = 0x4000, scoped, tag = 'input window, operand 6, single buffered']
    #allocation11 [shape = 's32[1]{0}', space=sflag, size = 0x4, scoped, tag = 'scoped memory for tpu_custom_call.1']
    #allocation12 [shape = 'u8[131072]{0}', space=vmem, size = 0x20000, scoped, tag = 'input window, operand 8, single buffered']
    #allocation13 [shape = 'u8[65536]{0}', space=vmem, size = 0x10000, scoped, tag = 'input window, operand 10, single buffered']
    #allocation14 [shape = 's32[1]{0}', space=sflag, size = 0x4, scoped, tag = 'scoped memory for tpu_custom_call.1']
    #allocation15 [shape = 'u8[8192]{0}', space=vmem, size = 0x2000, scoped, tag = 'output window, operand 0, single buffered']
    #allocation16 [shape = 'u8[1024]{0}', space=vmem, size = 0x400, scoped, tag = 'output window, operand 1, single buffered']
    #allocation17 [shape = 's32[1]{0}', space=sflag, size = 0x4, scoped, tag = 'scoped memory for tpu_custom_call.1']
    #allocation18 [shape = 'u8[1024]{0}', space=vmem, size = 0x400, scoped, tag = 'output window, operand 2, single buffered']
    %20 = vsyncpa [#allocation5], 0
    %21 = vsyncpa [#allocation8], 0
    %22 = vsyncpa [#allocation11], 0
    %23 = vsyncpa [#allocation14], 0
    %24 = vsyncpa [#allocation6], 0
    %25 = vsyncpa [#allocation17], 0
    // Predicated region
    $region2: #{tpu_custom_call.1} parent=1 // pred_check
      _
    $region3: #{tpu_custom_call.1} parent=1 // pred_check_branch
      %27 = sbr.rel (0) target = $region5
    $region4: #{tpu_custom_call.1} parent=1 // pred_region
      %s29 = ssub.s32 256, 256
      %30 = vsyncadd [#allocation5], %s29
      %s31 = sshll.u32 [#allocation4], 4
      %s32 = int_to_ptr.vmem [resolvable:$true] %s31
      %37 = dma.hbm_to_vmem [thread:$0]  %s0, 256, %s32, [#allocation5], 128, 128, 8
    $region5: #{tpu_custom_call.1} parent=1 // pred_fallthru
      _
    // Predicated region
    $region6: #{tpu_custom_call.1} parent=1 // pred_check
      _
    $region7: #{tpu_custom_call.1} parent=1 // pred_check_branch
      %39 = sbr.rel (0) target = $region9
    $region8: #{tpu_custom_call.1} parent=1 // pred_region
      _
    $region9: #{tpu_custom_call.1} parent=1 // pred_fallthru
      _
    // Predicated region
    $region10: #{tpu_custom_call.1} parent=1 // pred_check
      _
    $region11: #{tpu_custom_call.1} parent=1 // pred_check_branch
      %41 = sbr.rel (0) target = $region13
    $region12: #{tpu_custom_call.1} parent=1 // pred_region
      %s43 = ssub.s32 32, 32
      %44 = vsyncadd [#allocation8], %s43
      %s46 = sshll.u32 [#allocation7], 4
      %s47 = int_to_ptr.vmem [resolvable:$true] %s46
      %49 = dma.hbm_to_vmem [thread:$0]  %s2, 32, %s47, [#allocation8]
    $region13: #{tpu_custom_call.1} parent=1 // pred_fallthru
      _
    // Predicated region
    $region14: #{tpu_custom_call.1} parent=1 // pred_check
      _
    $region15: #{tpu_custom_call.1} parent=1 // pred_check_branch
      %51 = sbr.rel (0) target = $region17
    $region16: #{tpu_custom_call.1} parent=1 // pred_region
      _
    $region17: #{tpu_custom_call.1} parent=1 // pred_fallthru
      _
    // Predicated region
    $region18: #{tpu_custom_call.1} parent=1 // pred_check
      _
    $region19: #{tpu_custom_call.1} parent=1 // pred_check_branch
      %53 = sbr.rel (0) target = $region21
    $region20: #{tpu_custom_call.1} parent=1 // pred_region
      %s55 = ssub.s32 256, 256
      %56 = vsyncadd [#allocation8], %s55
      %s57 = sshll.u32 [#allocation9], 4
      %s58 = int_to_ptr.vmem [resolvable:$true] %s57
      %63 = dma.hbm_to_vmem [thread:$0]  %s4, 256, %s58, [#allocation8], 64, 64, 4
    $region21: #{tpu_custom_call.1} parent=1 // pred_fallthru
      _
    // Predicated region
    $region22: #{tpu_custom_call.1} parent=1 // pred_check
      _
    $region23: #{tpu_custom_call.1} parent=1 // pred_check_branch
      %65 = sbr.rel (0) target = $region25
    $region24: #{tpu_custom_call.1} parent=1 // pred_region
      _
    $region25: #{tpu_custom_call.1} parent=1 // pred_fallthru
      _
    // Predicated region
    $region26: #{tpu_custom_call.1} parent=1 // pred_check
      _
    $region27: #{tpu_custom_call.1} parent=1 // pred_check_branch
      %67 = sbr.rel (0) target = $region29
    $region28: #{tpu_custom_call.1} parent=1 // pred_region
      %s69 = ssub.s32 512, 512
      %70 = vsyncadd [#allocation11], %s69
      %s71 = sshll.u32 [#allocation10], 4
      %s72 = int_to_ptr.vmem [resolvable:$true] %s71
      %77 = dma.hbm_to_vmem [thread:$0]  %s6, 512, %s72, [#allocation11], 128, 128, 8
    $region29: #{tpu_custom_call.1} parent=1 // pred_fallthru
      _
    // Predicated region
    $region30: #{tpu_custom_call.1} parent=1 // pred_check
      _
    $region31: #{tpu_custom_call.1} parent=1 // pred_check_branch
      %79 = sbr.rel (0) target = $region33
    $region32: #{tpu_custom_call.1} parent=1 // pred_region
      _
    $region33: #{tpu_custom_call.1} parent=1 // pred_fallthru
      _
    // Predicated region
    $region34: #{tpu_custom_call.1} parent=1 // pred_check
      _
    $region35: #{tpu_custom_call.1} parent=1 // pred_check_branch
      %81 = sbr.rel (0) target = $region37
    $region36: #{tpu_custom_call.1} parent=1 // pred_region
      %s83 = ssub.s32 4096, 4096
      %84 = vsyncadd [#allocation11], %s83
      %s85 = sshll.u32 [#allocation12], 4
      %s86 = int_to_ptr.vmem [resolvable:$true] %s85
      %91 = dma.hbm_to_vmem [thread:$0]  %s8, 4096, %s86, [#allocation11], 128, 128, 8
    $region37: #{tpu_custom_call.1} parent=1 // pred_fallthru
      _
    // Predicated region
    $region38: #{tpu_custom_call.1} parent=1 // pred_check
      _
    $region39: #{tpu_custom_call.1} parent=1 // pred_check_branch
      %93 = sbr.rel (0) target = $region41
    $region40: #{tpu_custom_call.1} parent=1 // pred_region
      _
    $region41: #{tpu_custom_call.1} parent=1 // pred_fallthru
      _
    // Predicated region
    $region42: #{tpu_custom_call.1} parent=1 // pred_check
      _
    $region43: #{tpu_custom_call.1} parent=1 // pred_check_branch
      %95 = sbr.rel (0) target = $region45
    $region44: #{tpu_custom_call.1} parent=1 // pred_region
      %s97 = ssub.s32 2048, 2048
      %98 = vsyncadd [#allocation14], %s97
      %s99 = sshll.u32 [#allocation13], 4
      %s100 = int_to_ptr.vmem [resolvable:$true] %s99
      %105 = dma.hbm_to_vmem [thread:$0]  %s10, 2048, %s100, [#allocation14], 64, 64, 4
    $region45: #{tpu_custom_call.1} parent=1 // pred_fallthru
      _
    // Predicated region
    $region46: #{tpu_custom_call.1} parent=1 // pred_check
      _
    $region47: #{tpu_custom_call.1} parent=1 // pred_check_branch
      %107 = sbr.rel (0) target = $region49
    $region48: #{tpu_custom_call.1} parent=1 // pred_region
      _
    $region49: #{tpu_custom_call.1} parent=1 // pred_fallthru
      _
    // Predicated region
    $region50: #{tpu_custom_call.1} parent=1 // pred_check
      _
    $region51: #{tpu_custom_call.1} parent=1 // pred_check_branch
      %109 = sbr.rel (0) target = $region53
    $region52: #{tpu_custom_call.1} parent=1 // pred_region
      %110 = dma.done [#allocation5], 256
    $region53: #{tpu_custom_call.1} parent=1 // pred_fallthru
      _
    // Predicated region
    $region54: #{tpu_custom_call.1} parent=1 // pred_check
      _
    $region55: #{tpu_custom_call.1} parent=1 // pred_check_branch
      %112 = sbr.rel (0) target = $region57
    $region56: #{tpu_custom_call.1} parent=1 // pred_region
      %113 = dma.done [#allocation8], 32
    $region57: #{tpu_custom_call.1} parent=1 // pred_fallthru
      _
    // Predicated region
    $region58: #{tpu_custom_call.1} parent=1 // pred_check
      _
    $region59: #{tpu_custom_call.1} parent=1 // pred_check_branch
      %115 = sbr.rel (0) target = $region61
    $region60: #{tpu_custom_call.1} parent=1 // pred_region
      %116 = dma.done [#allocation8], 256
    $region61: #{tpu_custom_call.1} parent=1 // pred_fallthru
      _
    // Predicated region
    $region62: #{tpu_custom_call.1} parent=1 // pred_check
      _
    $region63: #{tpu_custom_call.1} parent=1 // pred_check_branch
      %118 = sbr.rel (0) target = $region65
    $region64: #{tpu_custom_call.1} parent=1 // pred_region
      %119 = dma.done [#allocation11], 512
    $region65: #{tpu_custom_call.1} parent=1 // pred_fallthru
      _
    // Predicated region
    $region66: #{tpu_custom_call.1} parent=1 // pred_check
      _
    $region67: #{tpu_custom_call.1} parent=1 // pred_check_branch
      %121 = sbr.rel (0) target = $region69
    $region68: #{tpu_custom_call.1} parent=1 // pred_region
      %122 = dma.done [#allocation11], 4096
    $region69: #{tpu_custom_call.1} parent=1 // pred_fallthru
      _
    // Predicated region
    $region70: #{tpu_custom_call.1} parent=1 // pred_check
      _
    $region71: #{tpu_custom_call.1} parent=1 // pred_check_branch
      %124 = sbr.rel (0) target = $region73
    $region72: #{tpu_custom_call.1} parent=1 // pred_region
      %125 = dma.done [#allocation14], 2048
    $region73: #{tpu_custom_call.1} parent=1 // pred_fallthru
      _
    %v127 = vld [vmem:[#allocation9] sm:$0xf]
    %v128 = vld [vmem:[#allocation9 + $0x4] sm:$0xf]
    %v129 = vld [vmem:[#allocation9 + $0x8] sm:$0xf]
    %v130 = vld [vmem:[#allocation9 + $0xc] sm:$0xf]
    %v131 = vld [vmem:[%s5] sm:$0x1]
    %v132 = vld [vmem:[#allocation4] sm:$0xff]
    %v133 = vld [vmem:[#allocation4 + $0x8] sm:$0xff]
    %v134 = vpack.c.bf16 %v133, %v132
    %v135 = vld [vmem:[%s3] sm:$0xf]
    %v136 = vld [vmem:[%s3 + $0x4] sm:$0xf]
    %v138 = vlaneseq
    %v139 = vshrl.u32 %v138, 7
    %v140 = vsub.s32 0, %v139
    %v141 = vrot.slane %v131, %v140
    %v145 = vunpack.c.l.b16 %v135
    %v146 = vunpack.c.l.b16 %v136
    %v147 = vpack.c.b16 %v146, %v145
    %vm149 = vcmask 130048
    %v151 = vsel %vm149, %v134, 0
    %153 = vmatprep.subr.bf16.mxu0 0
    %154 = vmatpush1.bf16.msra.mxu0 %v147
    %155 = vmatprep.subr.bf16.mxu0 0
    %156 = vmatpush1.bf16.msra.mxu0 0
    %157 = vmatprep.subr.bf16.mxu0 0
    %158 = vmatpush1.bf16.msra.mxu0 0
    %159 = vmatprep.subr.bf16.mxu0 0
    %160 = vmatpush1.bf16.msra.mxu0 0
    %161 = vmatprep.subr.bf16.mxu0 0
    %162 = vmatpush1.bf16.msra.mxu0 0
    %163 = vmatprep.subr.bf16.mxu0 0
    %164 = vmatpush1.bf16.msra.mxu0 0
    %165 = vmatprep.subr.bf16.mxu0 0
    %166 = vmatpush1.bf16.msra.mxu0 0
    %167 = vmatprep.subr.bf16.mxu0 0
    %168 = vmatpush1.bf16.msra.mxu0 0
    %169 = vmatprep.subr.bf16.mxu0 0
    %170 = vmatpush1.bf16.msra.mxu0 0
    %171 = vmatprep.subr.bf16.mxu0 0
    %172 = vmatpush1.bf16.msra.mxu0 0
    %173 = vmatprep.subr.bf16.mxu0 0
    %174 = vmatpush1.bf16.msra.mxu0 0
    %175 = vmatprep.subr.bf16.mxu0 0
    %176 = vmatpush1.bf16.msra.mxu0 0
    %177 = vmatprep.subr.bf16.mxu0 0
    %178 = vmatpush1.bf16.msra.mxu0 0
    %179 = vmatprep.subr.bf16.mxu0 0
    %180 = vmatpush1.bf16.msra.mxu0 0
    %181 = vmatprep.subr.bf16.mxu0 0
    %182 = vmatpush1.bf16.msra.mxu0 0
    %183 = vmatprep.subr.bf16.mxu0 0
    %184 = vmatpush1.bf16.msra.mxu0 0
    %185 = vmatprep.mubr.bf16.mxu0 0
    %186 = vmatmul.mubr.bf16.gmra.mrb[0].mxu0 %v151
    %v187 = vpop.f32.mrb[0].mxu0
    %v188 = vadd.f32 %v141, %v187
    %v189 = vpop.f32.mrb[0].mxu0
    %v190 = vpop.f32.mrb[0].mxu0
    %v191 = vadd.f32 %v141, %v190
    %v192 = vpop.f32.mrb[0].mxu0
    %193 = vdwg.mxu0
    %194 = vst [vmem:[#allocation2] sm:$0xff] %v188
    %195 = vst [vmem:[#allocation2 + $0x8] sm:$0xff] %v191
    %v196 = vld [vmem:[%s1] sm:$0x3]
    %v197 = vld [vmem:[#allocation7] sm:$0x3]
    %v198 = vld [vmem:[#allocation2] ss:$8 sm:$0x3]
    %v199 = vpack.c.bf16 %v196, %v196
    %v204 = vunpack.c.l.b16 %v127
    %v205 = vunpack.c.l.b16 %v128
    %v206 = vunpack.c.l.b16 %v129
    %v207 = vunpack.c.l.b16 %v130
    %v208 = vpack.c.b16 %v205, %v204
    %v209 = vpack.c.b16 %v207, %v206
    %vm212 = vcmask 261120
    %v214 = vsel %vm212, %v199, 0
    %216 = vmatprep.subr.bf16.mxu0 0
    %217 = vmatpush1.bf16.msra.mxu0 %v208
    %218 = vmatprep.subr.bf16.mxu0 0
    %219 = vmatpush1.bf16.msra.mxu0 %v209
    %220 = vmatprep.subr.bf16.mxu0 0
    %221 = vmatpush1.bf16.msra.mxu0 0
    %222 = vmatprep.subr.bf16.mxu0 0
    %223 = vmatpush1.bf16.msra.mxu0 0
    %224 = vmatprep.subr.bf16.mxu0 0
    %225 = vmatpush1.bf16.msra.mxu0 0
    %226 = vmatprep.subr.bf16.mxu0 0
    %227 = vmatpush1.bf16.msra.mxu0 0
    %228 = vmatprep.subr.bf16.mxu0 0
    %229 = vmatpush1.bf16.msra.mxu0 0
    %230 = vmatprep.subr.bf16.mxu0 0
    %231 = vmatpush1.bf16.msra.mxu0 0
    %232 = vmatprep.subr.bf16.mxu0 0
    %233 = vmatpush1.bf16.msra.mxu0 0
    %234 = vmatprep.subr.bf16.mxu0 0
    %235 = vmatpush1.bf16.msra.mxu0 0
    %236 = vmatprep.subr.bf16.mxu0 0
    %237 = vmatpush1.bf16.msra.mxu0 0
    %238 = vmatprep.subr.bf16.mxu0 0
    %239 = vmatpush1.bf16.msra.mxu0 0
    %240 = vmatprep.subr.bf16.mxu0 0
    %241 = vmatpush1.bf16.msra.mxu0 0
    %242 = vmatprep.subr.bf16.mxu0 0
    %243 = vmatpush1.bf16.msra.mxu0 0
    %244 = vmatprep.subr.bf16.mxu0 0
    %245 = vmatpush1.bf16.msra.mxu0 0
    %246 = vmatprep.subr.bf16.mxu0 0
    %247 = vmatpush1.bf16.msra.mxu0 0
    %248 = vmatprep.mubr.bf16.mxu0 0
    %249 = vmatmul.mubr.bf16.gmra.mrb[0].mxu0 %v214
    %v250 = vpop.f32.mrb[0].mxu0
    %v251 = vadd.f32 0.0, %v250
    %v252 = vpop.f32.mrb[0].mxu0
    %v253 = vpop.f32.mrb[0].mxu0
    %v254 = vpop.f32.mrb[0].mxu0
    %255 = vdwg.mxu0
    %v256 = vadd.f32 %v198, %v251
    %v257 = vxor.u32 %v256, 2147483648
    %v258 = vmul.f32 %v257, 1.442695
    %v259 = vpow.pop %v258
    %v260 = vadd.f32 %v259, 1.0
    %v261 = vrcp.pop %v260
    %v262 = vmul.f32 1.0, %v261
    %v263 = vtanh.pop %v256
    %265 = vrot.lane.b32.xlu0 %v197, 32
    %v266 = vpop.permute.xlu0 %265
    %v268 = vmul.f32 %v262, %v266
    %270 = vrot.lane.b32.xlu0 %v263, 64
    %v271 = vpop.permute.xlu0 %270
    %v273 = vmul.f32 %v262, %v271
    %275 = vrot.lane.b32.xlu0 %v273, 32
    %v276 = vpop.permute.xlu0 %275
    %v278 = vadd.f32 %v268, %v276
    %v279 = vtanh.pop %v278
    %281 = vrot.lane.b32.xlu0 %v279, 64
    %v282 = vpop.permute.xlu0 %281
    %v284 = vmul.f32 %v262, %v282
    %286 = vrot.lane.b32.xlu0 %v284, 32
    %v287 = vpop.permute.xlu0 %286
    %vm289 = vcmask 254976
    %290 = vst.msk [vmem:[#allocation3] sm:$0x3] %vm289, %v287
    %s291 = scalar_lea.vmem [#allocation2], 1
    %v292 = vld [vmem:[%s291] ss:$8 sm:$0x3]
    %v293 = vpack.c.bf16 %v284, %v284
    %295 = vrot.lane.b32.xlu0 %v293, 32
    %v296 = vpop.permute.xlu0 %295
    %v298 = vsel %vm212, %v296, 0
    %300 = vmatprep.subr.bf16.mxu0 0
    %301 = vmatpush1.bf16.msra.mxu0 %v208
    %302 = vmatprep.subr.bf16.mxu0 0
    %303 = vmatpush1.bf16.msra.mxu0 %v209
    %304 = vmatprep.subr.bf16.mxu0 0
    %305 = vmatpush1.bf16.msra.mxu0 0
    %306 = vmatprep.subr.bf16.mxu0 0
    %307 = vmatpush1.bf16.msra.mxu0 0
    %308 = vmatprep.subr.bf16.mxu0 0
    %309 = vmatpush1.bf16.msra.mxu0 0
    %310 = vmatprep.subr.bf16.mxu0 0
    %311 = vmatpush1.bf16.msra.mxu0 0
    %312 = vmatprep.subr.bf16.mxu0 0
    %313 = vmatpush1.bf16.msra.mxu0 0
    %314 = vmatprep.subr.bf16.mxu0 0
    %315 = vmatpush1.bf16.msra.mxu0 0
    %316 = vmatprep.subr.bf16.mxu0 0
    %317 = vmatpush1.bf16.msra.mxu0 0
    %318 = vmatprep.subr.bf16.mxu0 0
    %319 = vmatpush1.bf16.msra.mxu0 0
    %320 = vmatprep.subr.bf16.mxu0 0
    %321 = vmatpush1.bf16.msra.mxu0 0
    %322 = vmatprep.subr.bf16.mxu0 0
    %323 = vmatpush1.bf16.msra.mxu0 0
    %324 = vmatprep.subr.bf16.mxu0 0
    %325 = vmatpush1.bf16.msra.mxu0 0
    %326 = vmatprep.subr.bf16.mxu0 0
    %327 = vmatpush1.bf16.msra.mxu0 0
    %328 = vmatprep.subr.bf16.mxu0 0
    %329 = vmatpush1.bf16.msra.mxu0 0
    %330 = vmatprep.subr.bf16.mxu0 0
    %331 = vmatpush1.bf16.msra.mxu0 0
    %332 = vmatprep.mubr.bf16.mxu0 0
    %333 = vmatmul.mubr.bf16.gmra.mrb[0].mxu0 %v298
    %v334 = vpop.f32.mrb[0].mxu0
    %v335 = vadd.f32 0.0, %v334
    %v336 = vpop.f32.mrb[0].mxu0
    %v337 = vpop.f32.mrb[0].mxu0
    %v338 = vpop.f32.mrb[0].mxu0
    %339 = vdwg.mxu0
    %v340 = vadd.f32 %v292, %v335
    %v341 = vxor.u32 %v340, 2147483648
    %v342 = vmul.f32 %v341, 1.442695
    %v343 = vpow.pop %v342
    %v344 = vadd.f32 %v343, 1.0
    %v345 = vrcp.pop %v344
    %v346 = vmul.f32 1.0, %v345
    %v347 = vtanh.pop %v340
    %v348 = vmul.f32 %v346, %v278
    %350 = vrot.lane.b32.xlu0 %v347, 64
    %v351 = vpop.permute.xlu0 %350
    %v353 = vmul.f32 %v346, %v351
    %355 = vrot.lane.b32.xlu0 %v353, 32
    %v356 = vpop.permute.xlu0 %355
    %v358 = vadd.f32 %v348, %v356
    %v359 = vtanh.pop %v358
    %361 = vrot.lane.b32.xlu0 %v359, 64
    %v362 = vpop.permute.xlu0 %361
    %v364 = vmul.f32 %v346, %v362
    %366 = vrot.lane.b32.xlu0 %v364, 32
    %v367 = vpop.permute.xlu0 %366
    %369 = vst.msk [vmem:[#allocation3 + $0x2] sm:$0x3] %vm289, %v367
    %s370 = scalar_lea.vmem [#allocation2], 2
    %v371 = vld [vmem:[%s370] ss:$8 sm:$0x3]
    %v372 = vpack.c.bf16 %v364, %v364
    %374 = vrot.lane.b32.xlu0 %v372, 32
    %v375 = vpop.permute.xlu0 %374
    %v377 = vsel %vm212, %v375, 0
    %379 = vmatprep.subr.bf16.mxu0 0
    %380 = vmatpush1.bf16.msra.mxu0 %v208
    %381 = vmatprep.subr.bf16.mxu0 0
    %382 = vmatpush1.bf16.msra.mxu0 %v209
    %383 = vmatprep.subr.bf16.mxu0 0
    %384 = vmatpush1.bf16.msra.mxu0 0
    %385 = vmatprep.subr.bf16.mxu0 0
    %386 = vmatpush1.bf16.msra.mxu0 0
    %387 = vmatprep.subr.bf16.mxu0 0
    %388 = vmatpush1.bf16.msra.mxu0 0
    %389 = vmatprep.subr.bf16.mxu0 0
    %390 = vmatpush1.bf16.msra.mxu0 0
    %391 = vmatprep.subr.bf16.mxu0 0
    %392 = vmatpush1.bf16.msra.mxu0 0
    %393 = vmatprep.subr.bf16.mxu0 0
    %394 = vmatpush1.bf16.msra.mxu0 0
    %395 = vmatprep.subr.bf16.mxu0 0
    %396 = vmatpush1.bf16.msra.mxu0 0
    %397 = vmatprep.subr.bf16.mxu0 0
    %398 = vmatpush1.bf16.msra.mxu0 0
    %399 = vmatprep.subr.bf16.mxu0 0
    %400 = vmatpush1.bf16.msra.mxu0 0
    %401 = vmatprep.subr.bf16.mxu0 0
    %402 = vmatpush1.bf16.msra.mxu0 0
    %403 = vmatprep.subr.bf16.mxu0 0
    %404 = vmatpush1.bf16.msra.mxu0 0
    %405 = vmatprep.subr.bf16.mxu0 0
    %406 = vmatpush1.bf16.msra.mxu0 0
    %407 = vmatprep.subr.bf16.mxu0 0
    %408 = vmatpush1.bf16.msra.mxu0 0
    %409 = vmatprep.subr.bf16.mxu0 0
    %410 = vmatpush1.bf16.msra.mxu0 0
    %411 = vmatprep.mubr.bf16.mxu0 0
    %412 = vmatmul.mubr.bf16.gmra.mrb[0].mxu0 %v377
    %v413 = vpop.f32.mrb[0].mxu0
    %v414 = vadd.f32 0.0, %v413
    %v415 = vpop.f32.mrb[0].mxu0
    %v416 = vpop.f32.mrb[0].mxu0
    %v417 = vpop.f32.mrb[0].mxu0
    %418 = vdwg.mxu0
    %v419 = vadd.f32 %v371, %v414
    %v420 = vxor.u32 %v419, 2147483648
    %v421 = vmul.f32 %v420, 1.442695
    %v422 = vpow.pop %v421
    %v423 = vadd.f32 %v422, 1.0
    %v424 = vrcp.pop %v423
    %v425 = vmul.f32 1.0, %v424
    %v426 = vtanh.pop %v419
    %v427 = vmul.f32 %v425, %v358
    %429 = vrot.lane.b32.xlu0 %v426, 64
    %v430 = vpop.permute.xlu0 %429
    %v432 = vmul.f32 %v425, %v430
    %434 = vrot.lane.b32.xlu0 %v432, 32
    %v435 = vpop.permute.xlu0 %434
    %v437 = vadd.f32 %v427, %v435
    %v438 = vtanh.pop %v437
    %440 = vrot.lane.b32.xlu0 %v438, 64
    %v441 = vpop.permute.xlu0 %440
    %v443 = vmul.f32 %v425, %v441
    %445 = vrot.lane.b32.xlu0 %v443, 32
    %v446 = vpop.permute.xlu0 %445
    %448 = vst.msk [vmem:[#allocation3 + $0x4] sm:$0x3] %vm289, %v446
    %s449 = scalar_lea.vmem [#allocation2], 3
    %v450 = vld [vmem:[%s449] ss:$8 sm:$0x3]
    %v451 = vpack.c.bf16 %v443, %v443
    %453 = vrot.lane.b32.xlu0 %v451, 32
    %v454 = vpop.permute.xlu0 %453
    %v456 = vsel %vm212, %v454, 0
    %458 = vmatprep.subr.bf16.mxu0 0
    %459 = vmatpush1.bf16.msra.mxu0 %v208
    %460 = vmatprep.subr.bf16.mxu0 0
    %461 = vmatpush1.bf16.msra.mxu0 %v209
    %462 = vmatprep.subr.bf16.mxu0 0
    %463 = vmatpush1.bf16.msra.mxu0 0
    %464 = vmatprep.subr.bf16.mxu0 0
    %465 = vmatpush1.bf16.msra.mxu0 0
    %466 = vmatprep.subr.bf16.mxu0 0
    %467 = vmatpush1.bf16.msra.mxu0 0
    %468 = vmatprep.subr.bf16.mxu0 0
    %469 = vmatpush1.bf16.msra.mxu0 0
    %470 = vmatprep.subr.bf16.mxu0 0
    %471 = vmatpush1.bf16.msra.mxu0 0
    %472 = vmatprep.subr.bf16.mxu0 0
    %473 = vmatpush1.bf16.msra.mxu0 0
    %474 = vmatprep.subr.bf16.mxu0 0
    %475 = vmatpush1.bf16.msra.mxu0 0
    %476 = vmatprep.subr.bf16.mxu0 0
    %477 = vmatpush1.bf16.msra.mxu0 0
    %478 = vmatprep.subr.bf16.mxu0 0
    %479 = vmatpush1.bf16.msra.mxu0 0
    %480 = vmatprep.subr.bf16.mxu0 0
    %481 = vmatpush1.bf16.msra.mxu0 0
    %482 = vmatprep.subr.bf16.mxu0 0
    %483 = vmatpush1.bf16.msra.mxu0 0
    %484 = vmatprep.subr.bf16.mxu0 0
    %485 = vmatpush1.bf16.msra.mxu0 0
    %486 = vmatprep.subr.bf16.mxu0 0
    %487 = vmatpush1.bf16.msra.mxu0 0
    %488 = vmatprep.subr.bf16.mxu0 0
    %489 = vmatpush1.bf16.msra.mxu0 0
    %490 = vmatprep.mubr.bf16.mxu0 0
    %491 = vmatmul.mubr.bf16.gmra.mrb[0].mxu0 %v456
    %v492 = vpop.f32.mrb[0].mxu0
    %v493 = vadd.f32 0.0, %v492
    %v494 = vpop.f32.mrb[0].mxu0
    %v495 = vpop.f32.mrb[0].mxu0
    %v496 = vpop.f32.mrb[0].mxu0
    %497 = vdwg.mxu0
    %v498 = vadd.f32 %v450, %v493
    %v499 = vxor.u32 %v498, 2147483648
    %v500 = vmul.f32 %v499, 1.442695
    %v501 = vpow.pop %v500
    %v502 = vadd.f32 %v501, 1.0
    %v503 = vrcp.pop %v502
    %v504 = vmul.f32 1.0, %v503
    %v505 = vtanh.pop %v498
    %v506 = vmul.f32 %v504, %v437
    %508 = vrot.lane.b32.xlu0 %v505, 64
    %v509 = vpop.permute.xlu0 %508
    %v511 = vmul.f32 %v504, %v509
    %513 = vrot.lane.b32.xlu0 %v511, 32
    %v514 = vpop.permute.xlu0 %513
    %v516 = vadd.f32 %v506, %v514
    %v517 = vtanh.pop %v516
    %519 = vrot.lane.b32.xlu0 %v517, 64
    %v520 = vpop.permute.xlu0 %519
    %v522 = vmul.f32 %v504, %v520
    %524 = vrot.lane.b32.xlu0 %v522, 32
    %v525 = vpop.permute.xlu0 %524
    %527 = vst.msk [vmem:[#allocation3 + $0x6] sm:$0x3] %vm289, %v525
    %s528 = scalar_lea.vmem [#allocation2], 4
    %v529 = vld [vmem:[%s528] ss:$8 sm:$0x3]
    %v530 = vpack.c.bf16 %v522, %v522
    %532 = vrot.lane.b32.xlu0 %v530, 32
    %v533 = vpop.permute.xlu0 %532
    %v535 = vsel %vm212, %v533, 0
    %537 = vmatprep.subr.bf16.mxu0 0
    %538 = vmatpush1.bf16.msra.mxu0 %v208
    %539 = vmatprep.subr.bf16.mxu0 0
    %540 = vmatpush1.bf16.msra.mxu0 %v209
    %541 = vmatprep.subr.bf16.mxu0 0
    %542 = vmatpush1.bf16.msra.mxu0 0
    %543 = vmatprep.subr.bf16.mxu0 0
    %544 = vmatpush1.bf16.msra.mxu0 0
    %545 = vmatprep.subr.bf16.mxu0 0
    %546 = vmatpush1.bf16.msra.mxu0 0
    %547 = vmatprep.subr.bf16.mxu0 0
    %548 = vmatpush1.bf16.msra.mxu0 0
    %549 = vmatprep.subr.bf16.mxu0 0
    %550 = vmatpush1.bf16.msra.mxu0 0
    %551 = vmatprep.subr.bf16.mxu0 0
    %552 = vmatpush1.bf16.msra.mxu0 0
    %553 = vmatprep.subr.bf16.mxu0 0
    %554 = vmatpush1.bf16.msra.mxu0 0
    %555 = vmatprep.subr.bf16.mxu0 0
    %556 = vmatpush1.bf16.msra.mxu0 0
    %557 = vmatprep.subr.bf16.mxu0 0
    %558 = vmatpush1.bf16.msra.mxu0 0
    %559 = vmatprep.subr.bf16.mxu0 0
    %560 = vmatpush1.bf16.msra.mxu0 0
    %561 = vmatprep.subr.bf16.mxu0 0
    %562 = vmatpush1.bf16.msra.mxu0 0
    %563 = vmatprep.subr.bf16.mxu0 0
    %564 = vmatpush1.bf16.msra.mxu0 0
    %565 = vmatprep.subr.bf16.mxu0 0
    %566 = vmatpush1.bf16.msra.mxu0 0
    %567 = vmatprep.subr.bf16.mxu0 0
    %568 = vmatpush1.bf16.msra.mxu0 0
    %569 = vmatprep.mubr.bf16.mxu0 0
    %570 = vmatmul.mubr.bf16.gmra.mrb[0].mxu0 %v535
    %v571 = vpop.f32.mrb[0].mxu0
    %v572 = vadd.f32 0.0, %v571
    %v573 = vpop.f32.mrb[0].mxu0
    %v574 = vpop.f32.mrb[0].mxu0
    %v575 = vpop.f32.mrb[0].mxu0
    %576 = vdwg.mxu0
    %v577 = vadd.f32 %v529, %v572
    %v578 = vxor.u32 %v577, 2147483648
    %v579 = vmul.f32 %v578, 1.442695
    %v580 = vpow.pop %v579
    %v581 = vadd.f32 %v580, 1.0
    %v582 = vrcp.pop %v581
    %v583 = vmul.f32 1.0, %v582
    %v584 = vtanh.pop %v577
    %v585 = vmul.f32 %v583, %v516
    %587 = vrot.lane.b32.xlu0 %v584, 64
    %v588 = vpop.permute.xlu0 %587
    %v590 = vmul.f32 %v583, %v588
    %592 = vrot.lane.b32.xlu0 %v590, 32
    %v593 = vpop.permute.xlu0 %592
    %v595 = vadd.f32 %v585, %v593
    %v596 = vtanh.pop %v595
    %598 = vrot.lane.b32.xlu0 %v596, 64
    %v599 = vpop.permute.xlu0 %598
    %v601 = vmul.f32 %v583, %v599
    %603 = vrot.lane.b32.xlu0 %v601, 32
    %v604 = vpop.permute.xlu0 %603
    %606 = vst.msk [vmem:[#allocation3 + $0x8] sm:$0x3] %vm289, %v604
    %s607 = scalar_lea.vmem [#allocation2], 5
    %v608 = vld [vmem:[%s607] ss:$8 sm:$0x3]
    %v609 = vpack.c.bf16 %v601, %v601
    %611 = vrot.lane.b32.xlu0 %v609, 32
    %v612 = vpop.permute.xlu0 %611
    %v614 = vsel %vm212, %v612, 0
    %616 = vmatprep.subr.bf16.mxu0 0
    %617 = vmatpush1.bf16.msra.mxu0 %v208
    %618 = vmatprep.subr.bf16.mxu0 0
    %619 = vmatpush1.bf16.msra.mxu0 %v209
    %620 = vmatprep.subr.bf16.mxu0 0
    %621 = vmatpush1.bf16.msra.mxu0 0
    %622 = vmatprep.subr.bf16.mxu0 0
    %623 = vmatpush1.bf16.msra.mxu0 0
    %624 = vmatprep.subr.bf16.mxu0 0
    %625 = vmatpush1.bf16.msra.mxu0 0
    %626 = vmatprep.subr.bf16.mxu0 0
    %627 = vmatpush1.bf16.msra.mxu0 0
    %628 = vmatprep.subr.bf16.mxu0 0
    %629 = vmatpush1.bf16.msra.mxu0 0
    %630 = vmatprep.subr.bf16.mxu0 0
    %631 = vmatpush1.bf16.msra.mxu0 0
    %632 = vmatprep.subr.bf16.mxu0 0
    %633 = vmatpush1.bf16.msra.mxu0 0
    %634 = vmatprep.subr.bf16.mxu0 0
    %635 = vmatpush1.bf16.msra.mxu0 0
    %636 = vmatprep.subr.bf16.mxu0 0
    %637 = vmatpush1.bf16.msra.mxu0 0
    %638 = vmatprep.subr.bf16.mxu0 0
    %639 = vmatpush1.bf16.msra.mxu0 0
    %640 = vmatprep.subr.bf16.mxu0 0
    %641 = vmatpush1.bf16.msra.mxu0 0
    %642 = vmatprep.subr.bf16.mxu0 0
    %643 = vmatpush1.bf16.msra.mxu0 0
    %644 = vmatprep.subr.bf16.mxu0 0
    %645 = vmatpush1.bf16.msra.mxu0 0
    %646 = vmatprep.subr.bf16.mxu0 0
    %647 = vmatpush1.bf16.msra.mxu0 0
    %648 = vmatprep.mubr.bf16.mxu0 0
    %649 = vmatmul.mubr.bf16.gmra.mrb[0].mxu0 %v614
    %v650 = vpop.f32.mrb[0].mxu0
    %v651 = vadd.f32 0.0, %v650
    %v652 = vpop.f32.mrb[0].mxu0
    %v653 = vpop.f32.mrb[0].mxu0
    %v654 = vpop.f32.mrb[0].mxu0
    %655 = vdwg.mxu0
    %v656 = vadd.f32 %v608, %v651
    %v657 = vxor.u32 %v656, 2147483648
    %v658 = vmul.f32 %v657, 1.442695
    %v659 = vpow.pop %v658
    %v660 = vadd.f32 %v659, 1.0
    %v661 = vrcp.pop %v660
    %v662 = vmul.f32 1.0, %v661
    %v663 = vtanh.pop %v656
    %v664 = vmul.f32 %v662, %v595
    %666 = vrot.lane.b32.xlu0 %v663, 64
    %v667 = vpop.permute.xlu0 %666
    %v669 = vmul.f32 %v662, %v667
    %671 = vrot.lane.b32.xlu0 %v669, 32
    %v672 = vpop.permute.xlu0 %671
    %v674 = vadd.f32 %v664, %v672
    %v675 = vtanh.pop %v674
    %677 = vrot.lane.b32.xlu0 %v675, 64
    %v678 = vpop.permute.xlu0 %677
    %v680 = vmul.f32 %v662, %v678
    %682 = vrot.lane.b32.xlu0 %v680, 32
    %v683 = vpop.permute.xlu0 %682
    %685 = vst.msk [vmem:[#allocation3 + $0xa] sm:$0x3] %vm289, %v683
    %s686 = scalar_lea.vmem [#allocation2], 6
    %v687 = vld [vmem:[%s686] ss:$8 sm:$0x3]
    %v688 = vpack.c.bf16 %v680, %v680
    %690 = vrot.lane.b32.xlu0 %v688, 32
    %v691 = vpop.permute.xlu0 %690
    %v693 = vsel %vm212, %v691, 0
    %695 = vmatprep.subr.bf16.mxu0 0
    %696 = vmatpush1.bf16.msra.mxu0 %v208
    %697 = vmatprep.subr.bf16.mxu0 0
    %698 = vmatpush1.bf16.msra.mxu0 %v209
    %699 = vmatprep.subr.bf16.mxu0 0
    %700 = vmatpush1.bf16.msra.mxu0 0
    %701 = vmatprep.subr.bf16.mxu0 0
    %702 = vmatpush1.bf16.msra.mxu0 0
    %703 = vmatprep.subr.bf16.mxu0 0
    %704 = vmatpush1.bf16.msra.mxu0 0
    %705 = vmatprep.subr.bf16.mxu0 0
    %706 = vmatpush1.bf16.msra.mxu0 0
    %707 = vmatprep.subr.bf16.mxu0 0
    %708 = vmatpush1.bf16.msra.mxu0 0
    %709 = vmatprep.subr.bf16.mxu0 0
    %710 = vmatpush1.bf16.msra.mxu0 0
    %711 = vmatprep.subr.bf16.mxu0 0
    %712 = vmatpush1.bf16.msra.mxu0 0
    %713 = vmatprep.subr.bf16.mxu0 0
    %714 = vmatpush1.bf16.msra.mxu0 0
    %715 = vmatprep.subr.bf16.mxu0 0
    %716 = vmatpush1.bf16.msra.mxu0 0
    %717 = vmatprep.subr.bf16.mxu0 0
    %718 = vmatpush1.bf16.msra.mxu0 0
    %719 = vmatprep.subr.bf16.mxu0 0
    %720 = vmatpush1.bf16.msra.mxu0 0
    %721 = vmatprep.subr.bf16.mxu0 0
    %722 = vmatpush1.bf16.msra.mxu0 0
    %723 = vmatprep.subr.bf16.mxu0 0
    %724 = vmatpush1.bf16.msra.mxu0 0
    %725 = vmatprep.subr.bf16.mxu0 0
    %726 = vmatpush1.bf16.msra.mxu0 0
    %727 = vmatprep.mubr.bf16.mxu0 0
    %728 = vmatmul.mubr.bf16.gmra.mrb[0].mxu0 %v693
    %v729 = vpop.f32.mrb[0].mxu0
    %v730 = vadd.f32 0.0, %v729
    %v731 = vpop.f32.mrb[0].mxu0
    %v732 = vpop.f32.mrb[0].mxu0
    %v733 = vpop.f32.mrb[0].mxu0
    %734 = vdwg.mxu0
    %v735 = vadd.f32 %v687, %v730
    %v736 = vxor.u32 %v735, 2147483648
    %v737 = vmul.f32 %v736, 1.442695
    %v738 = vpow.pop %v737
    %v739 = vadd.f32 %v738, 1.0
    %v740 = vrcp.pop %v739
    %v741 = vmul.f32 1.0, %v740
    %v742 = vtanh.pop %v735
    %v743 = vmul.f32 %v741, %v674
    %745 = vrot.lane.b32.xlu0 %v742, 64
    %v746 = vpop.permute.xlu0 %745
    %v748 = vmul.f32 %v741, %v746
    %750 = vrot.lane.b32.xlu0 %v748, 32
    %v751 = vpop.permute.xlu0 %750
    %v753 = vadd.f32 %v743, %v751
    %v754 = vtanh.pop %v753
    %756 = vrot.lane.b32.xlu0 %v754, 64
    %v757 = vpop.permute.xlu0 %756
    %v759 = vmul.f32 %v741, %v757
    %761 = vrot.lane.b32.xlu0 %v759, 32
    %v762 = vpop.permute.xlu0 %761
    %764 = vst.msk [vmem:[#allocation3 + $0xc] sm:$0x3] %vm289, %v762
    %s765 = scalar_lea.vmem [#allocation2], 7
    %v766 = vld [vmem:[%s765] ss:$8 sm:$0x3]
    %v767 = vpack.c.bf16 %v759, %v759
    %769 = vrot.lane.b32.xlu0 %v767, 32
    %v770 = vpop.permute.xlu0 %769
    %v772 = vsel %vm212, %v770, 0
    %774 = vmatprep.subr.bf16.mxu0 0
    %775 = vmatpush1.bf16.msra.mxu0 %v208
    %776 = vmatprep.subr.bf16.mxu0 0
    %777 = vmatpush1.bf16.msra.mxu0 %v209
    %778 = vmatprep.subr.bf16.mxu0 0
    %779 = vmatpush1.bf16.msra.mxu0 0
    %780 = vmatprep.subr.bf16.mxu0 0
    %781 = vmatpush1.bf16.msra.mxu0 0
    %782 = vmatprep.subr.bf16.mxu0 0
    %783 = vmatpush1.bf16.msra.mxu0 0
    %784 = vmatprep.subr.bf16.mxu0 0
    %785 = vmatpush1.bf16.msra.mxu0 0
    %786 = vmatprep.subr.bf16.mxu0 0
    %787 = vmatpush1.bf16.msra.mxu0 0
    %788 = vmatprep.subr.bf16.mxu0 0
    %789 = vmatpush1.bf16.msra.mxu0 0
    %790 = vmatprep.subr.bf16.mxu0 0
    %791 = vmatpush1.bf16.msra.mxu0 0
    %792 = vmatprep.subr.bf16.mxu0 0
    %793 = vmatpush1.bf16.msra.mxu0 0
    %794 = vmatprep.subr.bf16.mxu0 0
    %795 = vmatpush1.bf16.msra.mxu0 0
    %796 = vmatprep.subr.bf16.mxu0 0
    %797 = vmatpush1.bf16.msra.mxu0 0
    %798 = vmatprep.subr.bf16.mxu0 0
    %799 = vmatpush1.bf16.msra.mxu0 0
    %800 = vmatprep.subr.bf16.mxu0 0
    %801 = vmatpush1.bf16.msra.mxu0 0
    %802 = vmatprep.subr.bf16.mxu0 0
    %803 = vmatpush1.bf16.msra.mxu0 0
    %804 = vmatprep.subr.bf16.mxu0 0
    %805 = vmatpush1.bf16.msra.mxu0 0
    %806 = vmatprep.mubr.bf16.mxu0 0
    %807 = vmatmul.mubr.bf16.gmra.mrb[0].mxu0 %v772
    %v808 = vpop.f32.mrb[0].mxu0
    %v809 = vadd.f32 0.0, %v808
    %v810 = vpop.f32.mrb[0].mxu0
    %v811 = vpop.f32.mrb[0].mxu0
    %v812 = vpop.f32.mrb[0].mxu0
    %813 = vdwg.mxu0
    %v814 = vadd.f32 %v766, %v809
    %v815 = vxor.u32 %v814, 2147483648
    %v816 = vmul.f32 %v815, 1.442695
    %v817 = vpow.pop %v816
    %v818 = vadd.f32 %v817, 1.0
    %v819 = vrcp.pop %v818
    %v820 = vmul.f32 1.0, %v819
    %v821 = vtanh.pop %v814
    %v822 = vmul.f32 %v820, %v753
    %824 = vrot.lane.b32.xlu0 %v821, 64
    %v825 = vpop.permute.xlu0 %824
    %v827 = vmul.f32 %v820, %v825
    %829 = vrot.lane.b32.xlu0 %v827, 32
    %v830 = vpop.permute.xlu0 %829
    %v832 = vadd.f32 %v822, %v830
    %v833 = vtanh.pop %v832
    %835 = vrot.lane.b32.xlu0 %v833, 64
    %v836 = vpop.permute.xlu0 %835
    %v838 = vmul.f32 %v820, %v836
    %840 = vrot.lane.b32.xlu0 %v838, 32
    %v841 = vpop.permute.xlu0 %840
    %843 = vst.msk [vmem:[#allocation3 + $0xe] sm:$0x3] %vm289, %v841
    %844 = vst.msk [vmem:[#allocation16] sm:$0x3] %vm289, %v841
    %846 = vrot.lane.b32.xlu0 %v832, 96
    %v847 = vpop.permute.xlu0 %846
    %849 = vst.msk [vmem:[#allocation18] sm:$0x3] %vm289, %v847
    %v850 = vld [vmem:[#allocation3] ss:$2 sm:$0xff]
    %s851 = scalar_lea.vmem [#allocation3], 1
    %v852 = vld [vmem:[%s851] ss:$2 sm:$0xff]
    %v853 = vpack.c.bf16 %v852, %v850
    %v854 = vld [vmem:[#allocation10] sm:$0xff]
    %v855 = vld [vmem:[#allocation10 + $0x8] sm:$0xff]
    %v856 = vld [vmem:[#allocation10 + $0x10] sm:$0xff]
    %v857 = vld [vmem:[#allocation10 + $0x18] sm:$0xff]
    %v858 = vld [vmem:[%s7] sm:$0x3]
    %v860 = vlaneseq
    %v861 = vshrl.u32 %v860, 7
    %v862 = vsub.s32 0, %v861
    %v863 = vrot.slane %v858, %v862
    %v864 = vlaneseq
    %v865 = vshrl.u32 %v864, 7
    %v866 = vsub.s32 1, %v865
    %v867 = vrot.slane %v858, %v866
    %v874 = vunpack.c.l.b16 %v854
    %v875 = vunpack.c.h.b16 %v854
    %v876 = vunpack.c.l.b16 %v855
    %v877 = vunpack.c.h.b16 %v855
    %v878 = vunpack.c.l.b16 %v856
    %v879 = vunpack.c.h.b16 %v856
    %v880 = vunpack.c.l.b16 %v857
    %v881 = vunpack.c.h.b16 %v857
    %v882 = vpack.c.b16 %v876, %v874
    %v883 = vpack.c.b16 %v877, %v875
    %v884 = vpack.c.b16 %v880, %v878
    %v885 = vpack.c.b16 %v881, %v879
    %v891 = vsel %vm212, %v853, 0
    %893 = vmatprep.subr.bf16.mxu0 %v883
    %894 = vmatpush1.bf16.msra.mxu0 %v882
    %895 = vmatprep.subr.bf16.mxu0 %v885
    %896 = vmatpush1.bf16.msra.mxu0 %v884
    %897 = vmatprep.subr.bf16.mxu0 0
    %898 = vmatpush1.bf16.msra.mxu0 0
    %899 = vmatprep.subr.bf16.mxu0 0
    %900 = vmatpush1.bf16.msra.mxu0 0
    %901 = vmatprep.subr.bf16.mxu0 0
    %902 = vmatpush1.bf16.msra.mxu0 0
    %903 = vmatprep.subr.bf16.mxu0 0
    %904 = vmatpush1.bf16.msra.mxu0 0
    %905 = vmatprep.subr.bf16.mxu0 0
    %906 = vmatpush1.bf16.msra.mxu0 0
    %907 = vmatprep.subr.bf16.mxu0 0
    %908 = vmatpush1.bf16.msra.mxu0 0
    %909 = vmatprep.subr.bf16.mxu0 0
    %910 = vmatpush1.bf16.msra.mxu0 0
    %911 = vmatprep.subr.bf16.mxu0 0
    %912 = vmatpush1.bf16.msra.mxu0 0
    %913 = vmatprep.subr.bf16.mxu0 0
    %914 = vmatpush1.bf16.msra.mxu0 0
    %915 = vmatprep.subr.bf16.mxu0 0
    %916 = vmatpush1.bf16.msra.mxu0 0
    %917 = vmatprep.subr.bf16.mxu0 0
    %918 = vmatpush1.bf16.msra.mxu0 0
    %919 = vmatprep.subr.bf16.mxu0 0
    %920 = vmatpush1.bf16.msra.mxu0 0
    %921 = vmatprep.subr.bf16.mxu0 0
    %922 = vmatpush1.bf16.msra.mxu0 0
    %923 = vmatprep.subr.bf16.mxu0 0
    %924 = vmatpush1.bf16.msra.mxu0 0
    %925 = vmatprep.mubr.bf16.mxu0 0
    %926 = vmatmul.mubr.bf16.gmra.mrb[0].mxu0 %v891
    %v927 = vpop.f32.mrb[0].mxu0
    %v928 = vadd.f32 %v863, %v927
    %v929 = vpop.f32.mrb[0].mxu0
    %v930 = vadd.f32 %v867, %v929
    %v931 = vpop.f32.mrb[0].mxu0
    %v932 = vadd.f32 %v863, %v931
    %v933 = vpop.f32.mrb[0].mxu0
    %v934 = vadd.f32 %v867, %v933
    %935 = vdwg.mxu0
    %v936 = vmax.f32 %v928, 0.0
    %v937 = vmax.f32 %v930, 0.0
    %v938 = vmax.f32 %v932, 0.0
    %v939 = vmax.f32 %v934, 0.0
    %v940 = vpack.c.bf16 %v938, %v936
    %v941 = vpack.c.bf16 %v939, %v937
    %v942 = vld [vmem:[#allocation12] sm:$0xff]
    %v943 = vld [vmem:[#allocation12 + $0x8] sm:$0xff]
    %v944 = vld [vmem:[#allocation12 + $0x10] sm:$0xff]
    %v945 = vld [vmem:[#allocation12 + $0x18] sm:$0xff]
    %v946 = vld [vmem:[#allocation12 + $0x20] sm:$0xff]
    %v947 = vld [vmem:[#allocation12 + $0x28] sm:$0xff]
    %v948 = vld [vmem:[#allocation12 + $0x30] sm:$0xff]
    %v949 = vld [vmem:[#allocation12 + $0x38] sm:$0xff]
    %v950 = vld [vmem:[#allocation12 + $0x40] sm:$0xff]
    %v951 = vld [vmem:[#allocation12 + $0x48] sm:$0xff]
    %v952 = vld [vmem:[#allocation12 + $0x50] sm:$0xff]
    %v953 = vld [vmem:[#allocation12 + $0x58] sm:$0xff]
    %v954 = vld [vmem:[#allocation12 + $0x60] sm:$0xff]
    %v955 = vld [vmem:[#allocation12 + $0x68] sm:$0xff]
    %v956 = vld [vmem:[#allocation12 + $0x70] sm:$0xff]
    %v957 = vld [vmem:[#allocation12 + $0x78] sm:$0xff]
    %v958 = vld [vmem:[#allocation12 + $0x80] sm:$0xff]
    %v959 = vld [vmem:[#allocation12 + $0x88] sm:$0xff]
    %v960 = vld [vmem:[#allocation12 + $0x90] sm:$0xff]
    %v961 = vld [vmem:[#allocation12 + $0x98] sm:$0xff]
    %v962 = vld [vmem:[#allocation12 + $0xa0] sm:$0xff]
    %v963 = vld [vmem:[#allocation12 + $0xa8] sm:$0xff]
    %v964 = vld [vmem:[#allocation12 + $0xb0] sm:$0xff]
    %v965 = vld [vmem:[#allocation12 + $0xb8] sm:$0xff]
    %v966 = vld [vmem:[#allocation12 + $0xc0] sm:$0xff]
    %v967 = vld [vmem:[#allocation12 + $0xc8] sm:$0xff]
    %v968 = vld [vmem:[#allocation12 + $0xd0] sm:$0xff]
    %v969 = vld [vmem:[#allocation12 + $0xd8] sm:$0xff]
    %v970 = vld [vmem:[#allocation12 + $0xe0] sm:$0xff]
    %v971 = vld [vmem:[#allocation12 + $0xe8] sm:$0xff]
    %v972 = vld [vmem:[#allocation12 + $0xf0] sm:$0xff]
    %v973 = vld [vmem:[#allocation12 + $0xf8] sm:$0xff]
    %v974 = vld [vmem:[%s9] sm:$0x3]
    %v976 = vlaneseq
    %v977 = vshrl.u32 %v976, 7
    %v978 = vsub.s32 0, %v977
    %v979 = vrot.slane %v974, %v978
    %v980 = vlaneseq
    %v981 = vshrl.u32 %v980, 7
    %v982 = vsub.s32 1, %v981
    %v983 = vrot.slane %v974, %v982
    %v1018 = vunpack.c.l.b16 %v942
    %v1019 = vunpack.c.h.b16 %v942
    %v1020 = vunpack.c.l.b16 %v943
    %v1021 = vunpack.c.h.b16 %v943
    %v1022 = vunpack.c.l.b16 %v944
    %v1023 = vunpack.c.h.b16 %v944
    %v1024 = vunpack.c.l.b16 %v945
    %v1025 = vunpack.c.h.b16 %v945
    %v1026 = vunpack.c.l.b16 %v946
    %v1027 = vunpack.c.h.b16 %v946
    %v1028 = vunpack.c.l.b16 %v947
    %v1029 = vunpack.c.h.b16 %v947
    %v1030 = vunpack.c.l.b16 %v948
    %v1031 = vunpack.c.h.b16 %v948
    %v1032 = vunpack.c.l.b16 %v949
    %v1033 = vunpack.c.h.b16 %v949
    %v1034 = vunpack.c.l.b16 %v950
    %v1035 = vunpack.c.h.b16 %v950
    %v1036 = vunpack.c.l.b16 %v951
    %v1037 = vunpack.c.h.b16 %v951
    %v1038 = vunpack.c.l.b16 %v952
    %v1039 = vunpack.c.h.b16 %v952
    %v1040 = vunpack.c.l.b16 %v953
    %v1041 = vunpack.c.h.b16 %v953
    %v1042 = vunpack.c.l.b16 %v954
    %v1043 = vunpack.c.h.b16 %v954
    %v1044 = vunpack.c.l.b16 %v955
    %v1045 = vunpack.c.h.b16 %v955
    %v1046 = vunpack.c.l.b16 %v956
    %v1047 = vunpack.c.h.b16 %v956
    %v1048 = vunpack.c.l.b16 %v957
    %v1049 = vunpack.c.h.b16 %v957
    %v1050 = vunpack.c.l.b16 %v958
    %v1051 = vunpack.c.h.b16 %v958
    %v1052 = vunpack.c.l.b16 %v959
    %v1053 = vunpack.c.h.b16 %v959
    %v1054 = vunpack.c.l.b16 %v960
    %v1055 = vunpack.c.h.b16 %v960
    %v1056 = vunpack.c.l.b16 %v961
    %v1057 = vunpack.c.h.b16 %v961
    %v1058 = vunpack.c.l.b16 %v962
    %v1059 = vunpack.c.h.b16 %v962
    %v1060 = vunpack.c.l.b16 %v963
    %v1061 = vunpack.c.h.b16 %v963
    %v1062 = vunpack.c.l.b16 %v964
    %v1063 = vunpack.c.h.b16 %v964
    %v1064 = vunpack.c.l.b16 %v965
    %v1065 = vunpack.c.h.b16 %v965
    %v1066 = vunpack.c.l.b16 %v966
    %v1067 = vunpack.c.h.b16 %v966
    %v1068 = vunpack.c.l.b16 %v967
    %v1069 = vunpack.c.h.b16 %v967
    %v1070 = vunpack.c.l.b16 %v968
    %v1071 = vunpack.c.h.b16 %v968
    %v1072 = vunpack.c.l.b16 %v969
    %v1073 = vunpack.c.h.b16 %v969
    %v1074 = vunpack.c.l.b16 %v970
    %v1075 = vunpack.c.h.b16 %v970
    %v1076 = vunpack.c.l.b16 %v971
    %v1077 = vunpack.c.h.b16 %v971
    %v1078 = vunpack.c.l.b16 %v972
    %v1079 = vunpack.c.h.b16 %v972
    %v1080 = vunpack.c.l.b16 %v973
    %v1081 = vunpack.c.h.b16 %v973
    %v1082 = vpack.c.b16 %v1020, %v1018
    %v1083 = vpack.c.b16 %v1021, %v1019
    %v1084 = vpack.c.b16 %v1024, %v1022
    %v1085 = vpack.c.b16 %v1025, %v1023
    %v1086 = vpack.c.b16 %v1028, %v1026
    %v1087 = vpack.c.b16 %v1029, %v1027
    %v1088 = vpack.c.b16 %v1032, %v1030
    %v1089 = vpack.c.b16 %v1033, %v1031
    %v1090 = vpack.c.b16 %v1036, %v1034
    %v1091 = vpack.c.b16 %v1037, %v1035
    %v1092 = vpack.c.b16 %v1040, %v1038
    %v1093 = vpack.c.b16 %v1041, %v1039
    %v1094 = vpack.c.b16 %v1044, %v1042
    %v1095 = vpack.c.b16 %v1045, %v1043
    %v1096 = vpack.c.b16 %v1048, %v1046
    %v1097 = vpack.c.b16 %v1049, %v1047
    %v1098 = vpack.c.b16 %v1052, %v1050
    %v1099 = vpack.c.b16 %v1053, %v1051
    %v1100 = vpack.c.b16 %v1056, %v1054
    %v1101 = vpack.c.b16 %v1057, %v1055
    %v1102 = vpack.c.b16 %v1060, %v1058
    %v1103 = vpack.c.b16 %v1061, %v1059
    %v1104 = vpack.c.b16 %v1064, %v1062
    %v1105 = vpack.c.b16 %v1065, %v1063
    %v1106 = vpack.c.b16 %v1068, %v1066
    %v1107 = vpack.c.b16 %v1069, %v1067
    %v1108 = vpack.c.b16 %v1072, %v1070
    %v1109 = vpack.c.b16 %v1073, %v1071
    %v1110 = vpack.c.b16 %v1076, %v1074
    %v1111 = vpack.c.b16 %v1077, %v1075
    %v1112 = vpack.c.b16 %v1080, %v1078
    %v1113 = vpack.c.b16 %v1081, %v1079
    %1146 = vmatprep.subr.bf16.mxu0 %v1083
    %1147 = vmatpush1.bf16.msra.mxu0 %v1082
    %1148 = vmatprep.subr.bf16.mxu0 %v1085
    %1149 = vmatpush1.bf16.msra.mxu0 %v1084
    %1150 = vmatprep.subr.bf16.mxu0 %v1087
    %1151 = vmatpush1.bf16.msra.mxu0 %v1086
    %1152 = vmatprep.subr.bf16.mxu0 %v1089
    %1153 = vmatpush1.bf16.msra.mxu0 %v1088
    %1154 = vmatprep.subr.bf16.mxu0 %v1091
    %1155 = vmatpush1.bf16.msra.mxu0 %v1090
    %1156 = vmatprep.subr.bf16.mxu0 %v1093
    %1157 = vmatpush1.bf16.msra.mxu0 %v1092
    %1158 = vmatprep.subr.bf16.mxu0 %v1095
    %1159 = vmatpush1.bf16.msra.mxu0 %v1094
    %1160 = vmatprep.subr.bf16.mxu0 %v1097
    %1161 = vmatpush1.bf16.msra.mxu0 %v1096
    %1162 = vmatprep.subr.bf16.mxu0 %v1099
    %1163 = vmatpush1.bf16.msra.mxu0 %v1098
    %1164 = vmatprep.subr.bf16.mxu0 %v1101
    %1165 = vmatpush1.bf16.msra.mxu0 %v1100
    %1166 = vmatprep.subr.bf16.mxu0 %v1103
    %1167 = vmatpush1.bf16.msra.mxu0 %v1102
    %1168 = vmatprep.subr.bf16.mxu0 %v1105
    %1169 = vmatpush1.bf16.msra.mxu0 %v1104
    %1170 = vmatprep.subr.bf16.mxu0 %v1107
    %1171 = vmatpush1.bf16.msra.mxu0 %v1106
    %1172 = vmatprep.subr.bf16.mxu0 %v1109
    %1173 = vmatpush1.bf16.msra.mxu0 %v1108
    %1174 = vmatprep.subr.bf16.mxu0 %v1111
    %1175 = vmatpush1.bf16.msra.mxu0 %v1110
    %1176 = vmatprep.subr.bf16.mxu0 %v1113
    %1177 = vmatpush1.bf16.msra.mxu0 %v1112
    %1178 = vmatprep.mubr.bf16.mxu0 %v941
    %1179 = vmatmul.mubr.bf16.gmra.mrb[0].mxu0 %v940
    %v1180 = vpop.f32.mrb[0].mxu0
    %v1181 = vadd.f32 %v979, %v1180
    %v1182 = vpop.f32.mrb[0].mxu0
    %v1183 = vadd.f32 %v983, %v1182
    %v1184 = vpop.f32.mrb[0].mxu0
    %v1185 = vadd.f32 %v979, %v1184
    %v1186 = vpop.f32.mrb[0].mxu0
    %v1187 = vadd.f32 %v983, %v1186
    %1188 = vdwg.mxu0
    %v1189 = vmax.f32 %v1181, 0.0
    %v1190 = vmax.f32 %v1183, 0.0
    %v1191 = vmax.f32 %v1185, 0.0
    %v1192 = vmax.f32 %v1187, 0.0
    %v1193 = vpack.c.bf16 %v1191, %v1189
    %v1194 = vpack.c.bf16 %v1192, %v1190
    %v1195 = vld [vmem:[#allocation13] sm:$0xf]
    %v1196 = vld [vmem:[#allocation13 + $0x4] sm:$0xf]
    %v1197 = vld [vmem:[#allocation13 + $0x8] sm:$0xf]
    %v1198 = vld [vmem:[#allocation13 + $0xc] sm:$0xf]
    %v1199 = vld [vmem:[#allocation13 + $0x10] sm:$0xf]
    %v1200 = vld [vmem:[#allocation13 + $0x14] sm:$0xf]
    %v1201 = vld [vmem:[#allocation13 + $0x18] sm:$0xf]
    %v1202 = vld [vmem:[#allocation13 + $0x1c] sm:$0xf]
    %v1203 = vld [vmem:[#allocation13 + $0x20] sm:$0xf]
    %v1204 = vld [vmem:[#allocation13 + $0x24] sm:$0xf]
    %v1205 = vld [vmem:[#allocation13 + $0x28] sm:$0xf]
    %v1206 = vld [vmem:[#allocation13 + $0x2c] sm:$0xf]
    %v1207 = vld [vmem:[#allocation13 + $0x30] sm:$0xf]
    %v1208 = vld [vmem:[#allocation13 + $0x34] sm:$0xf]
    %v1209 = vld [vmem:[#allocation13 + $0x38] sm:$0xf]
    %v1210 = vld [vmem:[#allocation13 + $0x3c] sm:$0xf]
    %v1211 = vld [vmem:[#allocation13 + $0x40] sm:$0xf]
    %v1212 = vld [vmem:[#allocation13 + $0x44] sm:$0xf]
    %v1213 = vld [vmem:[#allocation13 + $0x48] sm:$0xf]
    %v1214 = vld [vmem:[#allocation13 + $0x4c] sm:$0xf]
    %v1215 = vld [vmem:[#allocation13 + $0x50] sm:$0xf]
    %v1216 = vld [vmem:[#allocation13 + $0x54] sm:$0xf]
    %v1217 = vld [vmem:[#allocation13 + $0x58] sm:$0xf]
    %v1218 = vld [vmem:[#allocation13 + $0x5c] sm:$0xf]
    %v1219 = vld [vmem:[#allocation13 + $0x60] sm:$0xf]
    %v1220 = vld [vmem:[#allocation13 + $0x64] sm:$0xf]
    %v1221 = vld [vmem:[#allocation13 + $0x68] sm:$0xf]
    %v1222 = vld [vmem:[#allocation13 + $0x6c] sm:$0xf]
    %v1223 = vld [vmem:[#allocation13 + $0x70] sm:$0xf]
    %v1224 = vld [vmem:[#allocation13 + $0x74] sm:$0xf]
    %v1225 = vld [vmem:[#allocation13 + $0x78] sm:$0xf]
    %v1226 = vld [vmem:[#allocation13 + $0x7c] sm:$0xf]
    %v1227 = vld [vmem:[%s11] sm:$0x1]
    %v1229 = vlaneseq
    %v1230 = vshrl.u32 %v1229, 7
    %v1231 = vsub.s32 0, %v1230
    %v1232 = vrot.slane %v1227, %v1231
    %v1266 = vunpack.c.l.b16 %v1195
    %v1267 = vunpack.c.l.b16 %v1196
    %v1268 = vunpack.c.l.b16 %v1197
    %v1269 = vunpack.c.l.b16 %v1198
    %v1270 = vunpack.c.l.b16 %v1199
    %v1271 = vunpack.c.l.b16 %v1200
    %v1272 = vunpack.c.l.b16 %v1201
    %v1273 = vunpack.c.l.b16 %v1202
    %v1274 = vunpack.c.l.b16 %v1203
    %v1275 = vunpack.c.l.b16 %v1204
    %v1276 = vunpack.c.l.b16 %v1205
    %v1277 = vunpack.c.l.b16 %v1206
    %v1278 = vunpack.c.l.b16 %v1207
    %v1279 = vunpack.c.l.b16 %v1208
    %v1280 = vunpack.c.l.b16 %v1209
    %v1281 = vunpack.c.l.b16 %v1210
    %v1282 = vunpack.c.l.b16 %v1211
    %v1283 = vunpack.c.l.b16 %v1212
    %v1284 = vunpack.c.l.b16 %v1213
    %v1285 = vunpack.c.l.b16 %v1214
    %v1286 = vunpack.c.l.b16 %v1215
    %v1287 = vunpack.c.l.b16 %v1216
    %v1288 = vunpack.c.l.b16 %v1217
    %v1289 = vunpack.c.l.b16 %v1218
    %v1290 = vunpack.c.l.b16 %v1219
    %v1291 = vunpack.c.l.b16 %v1220
    %v1292 = vunpack.c.l.b16 %v1221
    %v1293 = vunpack.c.l.b16 %v1222
    %v1294 = vunpack.c.l.b16 %v1223
    %v1295 = vunpack.c.l.b16 %v1224
    %v1296 = vunpack.c.l.b16 %v1225
    %v1297 = vunpack.c.l.b16 %v1226
    %v1298 = vpack.c.b16 %v1267, %v1266
    %v1299 = vpack.c.b16 %v1269, %v1268
    %v1300 = vpack.c.b16 %v1271, %v1270
    %v1301 = vpack.c.b16 %v1273, %v1272
    %v1302 = vpack.c.b16 %v1275, %v1274
    %v1303 = vpack.c.b16 %v1277, %v1276
    %v1304 = vpack.c.b16 %v1279, %v1278
    %v1305 = vpack.c.b16 %v1281, %v1280
    %v1306 = vpack.c.b16 %v1283, %v1282
    %v1307 = vpack.c.b16 %v1285, %v1284
    %v1308 = vpack.c.b16 %v1287, %v1286
    %v1309 = vpack.c.b16 %v1289, %v1288
    %v1310 = vpack.c.b16 %v1291, %v1290
    %v1311 = vpack.c.b16 %v1293, %v1292
    %v1312 = vpack.c.b16 %v1295, %v1294
    %v1313 = vpack.c.b16 %v1297, %v1296
    %1330 = vmatprep.subr.bf16.mxu0 0
    %1331 = vmatpush1.bf16.msra.mxu0 %v1298
    %1332 = vmatprep.subr.bf16.mxu0 0
    %1333 = vmatpush1.bf16.msra.mxu0 %v1299
    %1334 = vmatprep.subr.bf16.mxu0 0
    %1335 = vmatpush1.bf16.msra.mxu0 %v1300
    %1336 = vmatprep.subr.bf16.mxu0 0
    %1337 = vmatpush1.bf16.msra.mxu0 %v1301
    %1338 = vmatprep.subr.bf16.mxu0 0
    %1339 = vmatpush1.bf16.msra.mxu0 %v1302
    %1340 = vmatprep.subr.bf16.mxu0 0
    %1341 = vmatpush1.bf16.msra.mxu0 %v1303
    %1342 = vmatprep.subr.bf16.mxu0 0
    %1343 = vmatpush1.bf16.msra.mxu0 %v1304
    %1344 = vmatprep.subr.bf16.mxu0 0
    %1345 = vmatpush1.bf16.msra.mxu0 %v1305
    %1346 = vmatprep.subr.bf16.mxu0 0
    %1347 = vmatpush1.bf16.msra.mxu0 %v1306
    %1348 = vmatprep.subr.bf16.mxu0 0
    %1349 = vmatpush1.bf16.msra.mxu0 %v1307
    %1350 = vmatprep.subr.bf16.mxu0 0
    %1351 = vmatpush1.bf16.msra.mxu0 %v1308
    %1352 = vmatprep.subr.bf16.mxu0 0
    %1353 = vmatpush1.bf16.msra.mxu0 %v1309
    %1354 = vmatprep.subr.bf16.mxu0 0
    %1355 = vmatpush1.bf16.msra.mxu0 %v1310
    %1356 = vmatprep.subr.bf16.mxu0 0
    %1357 = vmatpush1.bf16.msra.mxu0 %v1311
    %1358 = vmatprep.subr.bf16.mxu0 0
    %1359 = vmatpush1.bf16.msra.mxu0 %v1312
    %1360 = vmatprep.subr.bf16.mxu0 0
    %1361 = vmatpush1.bf16.msra.mxu0 %v1313
    %1362 = vmatprep.mubr.bf16.mxu0 %v1194
    %1363 = vmatmul.mubr.bf16.gmra.mrb[0].mxu0 %v1193
    %v1364 = vpop.f32.mrb[0].mxu0
    %v1365 = vadd.f32 %v1232, %v1364
    %v1366 = vpop.f32.mrb[0].mxu0
    %v1367 = vpop.f32.mrb[0].mxu0
    %v1368 = vadd.f32 %v1232, %v1367
    %v1369 = vpop.f32.mrb[0].mxu0
    %1370 = vdwg.mxu0
    %1371 = vst [vmem:[#allocation15] sm:$0xff] %v1365
    %1372 = vst [vmem:[#allocation15 + $0x8] sm:$0xff] %v1368
    // Predicated region
    $region74: #{tpu_custom_call.1} parent=1 // pred_check
      _
    $region75: #{tpu_custom_call.1} parent=1 // pred_check_branch
      %1374 = sbr.rel (0) target = $region77
    $region76: #{tpu_custom_call.1} parent=1 // pred_region
      %s1376 = ssub.s32 256, 256
      %1377 = vsyncadd [#allocation6], %s1376
      %s1378 = sshll.u32 [#allocation15], 4
      %s1379 = int_to_ptr.vmem [resolvable:$true] %s1378
      %1384 = dma.vmem_to_hbm [thread:$0]  %s1379, 256, %s12, [#allocation6], 128, 128, 8
    $region77: #{tpu_custom_call.1} parent=1 // pred_fallthru
      _
    // Predicated region
    $region78: #{tpu_custom_call.1} parent=1 // pred_check
      _
    $region79: #{tpu_custom_call.1} parent=1 // pred_check_branch
      %1386 = sbr.rel (0) target = $region81
    $region80: #{tpu_custom_call.1} parent=1 // pred_region
      %s1388 = ssub.s32 32, 32
      %1389 = vsyncadd [#allocation17], %s1388
      %s1391 = sshll.u32 [#allocation16], 4
      %s1392 = int_to_ptr.vmem [resolvable:$true] %s1391
      %1394 = dma.vmem_to_hbm [thread:$0]  %s1392, 32, %s13, [#allocation17]
    $region81: #{tpu_custom_call.1} parent=1 // pred_fallthru
      _
    // Predicated region
    $region82: #{tpu_custom_call.1} parent=1 // pred_check
      _
    $region83: #{tpu_custom_call.1} parent=1 // pred_check_branch
      %1396 = sbr.rel (0) target = $region85
    $region84: #{tpu_custom_call.1} parent=1 // pred_region
      %s1398 = ssub.s32 32, 32
      %1399 = vsyncadd [#allocation17], %s1398
      %s1401 = sshll.u32 [#allocation18], 4
      %s1402 = int_to_ptr.vmem [resolvable:$true] %s1401
      %1404 = dma.vmem_to_hbm [thread:$0]  %s1402, 32, %s14, [#allocation17]
    $region85: #{tpu_custom_call.1} parent=1 // pred_fallthru
      _
    // Predicated region
    $region86: #{tpu_custom_call.1} parent=1 // pred_check
      _
    $region87: #{tpu_custom_call.1} parent=1 // pred_check_branch
      %1406 = sbr.rel (0) target = $region89
    $region88: #{tpu_custom_call.1} parent=1 // pred_region
      %1407 = dma.done [#allocation6], 256
    $region89: #{tpu_custom_call.1} parent=1 // pred_fallthru
      _
    // Predicated region
    $region90: #{tpu_custom_call.1} parent=1 // pred_check
      _
    $region91: #{tpu_custom_call.1} parent=1 // pred_check_branch
      %1409 = sbr.rel (0) target = $region93
    $region92: #{tpu_custom_call.1} parent=1 // pred_region
      %1410 = dma.done [#allocation17], 32
    $region93: #{tpu_custom_call.1} parent=1 // pred_fallthru
      _
    // Predicated region
    $region94: #{tpu_custom_call.1} parent=1 // pred_check
      _
    $region95: #{tpu_custom_call.1} parent=1 // pred_check_branch
      %1412 = sbr.rel (0) target = $region97
    $region96: #{tpu_custom_call.1} parent=1 // pred_region
      %1413 = dma.done [#allocation17], 32
    $region97: #{tpu_custom_call.1} parent=1 // pred_fallthru
      _
    %1414 = vsyncpa [#allocation5], 1
    %1415 = vsyncpa [#allocation8], 1
    %1416 = vsyncpa [#allocation11], 1
    %1417 = vsyncpa [#allocation14], 1
    %1418 = vsyncpa [#allocation6], 1
    %1419 = vsyncpa [#allocation17], 1

</llo_original>
